<compile_context>
chip_gen: v5e
topology: v5e:2x2
jax: 0.10.0
libtpu: 0.0.40
codegen_flags: <defaults>
</compile_context>

<pallas_src>
import functools
import math

import jax
import jax.numpy as jnp
from jax.experimental import pallas as pl
from jax.experimental.pallas import tpu as pltpu


# ----------------------------- Pallas kernel -------------------------------

def _mwtf_kernel(x_ref, wqkv_ref, bqkv_ref, o_ref, *, window_list):
    """One time-chunk: runs MultiDomainAttention for every (window, block) pair.

    x_ref:    (B, C, D)            C = lcm(window_list) (or T)
    wqkv_ref: (n_win, D, 3D)       [Wq | Wk | Wv] per window (already transposed)
    bqkv_ref: (n_win, 1, 3D)
    o_ref:    (B, C, n_win * D)    concatenated output (window axis on lanes)
    """
    B, C, D = x_ref.shape
    inv_sqrt_d = D ** -0.5

    for widx, W in enumerate(window_list):          # static unroll over windows
        wqkv = wqkv_ref[widx]                       # (D, 3D)
        bqkv = bqkv_ref[widx]                       # (1, 3D)
        inv_sqrt_w = W ** -0.5
        nb = C // W
        for n in range(nb):                         # static unroll over blocks
            xb = x_ref[:, n * W:(n + 1) * W, :].astype(jnp.float32)   # (B, W, D)

            # F.normalize(F_block): p=2, dim=1 (window axis), eps=1e-12
            sumsq = jnp.sum(xb * xb, axis=1, keepdims=True)
            xn = xb * jax.lax.rsqrt(jnp.maximum(sumsq, 1e-24))

            # Fused Q/K/V projection: one (B*W, D) x (D, 3D) MXU matmul.
            qkv = jnp.dot(xn.reshape(B * W, D), wqkv,
                          preferred_element_type=jnp.float32) + bqkv
            q = qkv[:, :D].reshape(B, W, D)
            k = qkv[:, D:2 * D].reshape(B, W, D)
            v = qkv[:, 2 * D:].reshape(B, W, D)

            # beta_t = bmm(Q, K^T) / sqrt(D);  A_t = softmax(beta_t, dim=1)
            beta_t = jnp.einsum('bwd,bvd->bwv', q * inv_sqrt_d, k,
                                preferred_element_type=jnp.float32)   # (B, W, W)
            e_t = jnp.exp(beta_t - jnp.max(beta_t, axis=1, keepdims=True))
            a_t = e_t * pl.reciprocal(jnp.sum(e_t, axis=1, keepdims=True),
                                      approx=True)

            # beta_f = bmm(K^T, Q) / sqrt(W);  A_f = softmax(beta_f, dim=0)
            # (dim=0 is the batch axis — valid because the full batch is in-block)
            beta_f = jnp.einsum('bwd,bwe->bde', k * inv_sqrt_w, q,
                                preferred_element_type=jnp.float32)   # (B, D, D)
            e_f = jnp.exp(beta_f - jnp.max(beta_f, axis=0, keepdims=True))
            a_f = e_f * pl.reciprocal(jnp.sum(e_f, axis=0, keepdims=True),
                                      approx=True)

            # V_t = bmm(A_t, V);  V_tf = bmm(V_t, A_f)
            v_t = jnp.einsum('bwv,bvd->bwd', a_t, v,
                             preferred_element_type=jnp.float32)
            v_tf = jnp.einsum('bwd,bde->bwe', v_t, a_f,
                              preferred_element_type=jnp.float32)

            o_ref[:, n * W:(n + 1) * W, widx * D:(widx + 1) * D] = \
                v_tf.astype(o_ref.dtype)


# ------------------------------- wrapper ------------------------------------

def mwtf_forward(feat, all_params, temporal_window_list):
    """MWTF.forward: all windows + blocks in one pallas_call, output already
    concatenated along the feature axis: (B, T, D * n_windows)."""
    B, T, D = feat.shape
    n_win = len(temporal_window_list)
    for w in temporal_window_list:
        assert T % w == 0, f"T={T} must be divisible by window {w}"

    # Per window: fuse Wq/Wk/Wv -> (D, 3D) and bq/bk/bv -> (1, 3D); stack windows.
    wqkv = jnp.stack([jnp.concatenate([p['wq'], p['wk'], p['wv']], axis=1)
                      for p in all_params])          # (n_win, D, 3D)
    bqkv = jnp.stack([jnp.concatenate([p['bq'], p['bk'], p['bv']], axis=1)
                      for p in all_params])          # (n_win, 1, 3D)

    # Time-chunk per grid step: every window length tiles it exactly.
    # (lcm of divisors of T divides T.)
    chunk = math.lcm(*temporal_window_list)
    if chunk != T and chunk % 8 != 0:    # keep the sublane block dim tileable
        chunk = T
    num_chunks = T // chunk

    kernel = functools.partial(_mwtf_kernel,
                               window_list=tuple(temporal_window_list))
    weight_full = lambda i: (0, 0, 0)
    return pl.pallas_call(
        kernel,
        out_shape=jax.ShapeDtypeStruct((B, T, n_win * D), feat.dtype),
        grid=(num_chunks,),
        in_specs=[
            pl.BlockSpec((B, chunk, D), lambda i: (0, i, 0)),      # Feat chunk
            pl.BlockSpec((n_win, D, 3 * D), weight_full),          # fused W
            pl.BlockSpec((n_win, 1, 3 * D), weight_full),          # fused b
        ],
        out_specs=pl.BlockSpec((B, chunk, n_win * D), lambda i: (0, i, 0)),
        compiler_params=pltpu.CompilerParams(
            dimension_semantics=("parallel",)),
    )(feat, wqkv, bqkv)
    # TODO(synk): self.extract = LSTM(feature_dim*len(list), 512, 2, 0.1,
    # residual_embeddings=True) — the custom LSTM class is not defined in the
    # reference, so that stage is omitted here.


# --------------------------- plain-JAX reference ---------------------------

def _mda_ref(x, p, window):
    D = x.shape[-1]
    norm = jnp.sqrt(jnp.sum(x * x, axis=1, keepdims=True))
    xn = x / jnp.maximum(norm, 1e-12)
    q = xn @ p['wq'] + p['bq']
    k = xn @ p['wk'] + p['bk']
    v = xn @ p['wv'] + p['bv']
    beta_t = jnp.einsum('bwd,bvd->bwv', q, k) / (D ** 0.5)
    a_t = jax.nn.softmax(beta_t, axis=1)
    beta_f = jnp.einsum('bwd,bwe->bde', k, q) / (window ** 0.5)
    a_f = jax.nn.softmax(beta_f, axis=0)
    v_t = jnp.einsum('bwv,bvd->bwd', a_t, v)
    return jnp.einsum('bwd,bde->bwe', v_t, a_f)


def mwtf_ref(feat, all_params, temporal_window_list):
    B, T, D = feat.shape
    outs = []
    for p, w in zip(all_params, temporal_window_list):
        nb = T // w
        blocks = [_mda_ref(feat[:, i * w:(i + 1) * w, :], p, w) for i in range(nb)]
        outs.append(jnp.concatenate(blocks, axis=1))
    return jnp.concatenate(outs, axis=2)


# ------------------------------- param init --------------------------------

def init_params(key, feature_dim, n_windows):
    params = []
    scale = 1.0 / (feature_dim ** 0.5)
    for i in range(n_windows):
        ks = jax.random.split(jax.random.fold_in(key, i), 6)
        params.append({
            'wq': jax.random.uniform(ks[0], (feature_dim, feature_dim), jnp.float32, -scale, scale),
            'bq': jax.random.uniform(ks[1], (1, feature_dim), jnp.float32, -scale, scale),
            'wk': jax.random.uniform(ks[2], (feature_dim, feature_dim), jnp.float32, -scale, scale),
            'bk': jax.random.uniform(ks[3], (1, feature_dim), jnp.float32, -scale, scale),
            'wv': jax.random.uniform(ks[4], (feature_dim, feature_dim), jnp.float32, -scale, scale),
            'bv': jax.random.uniform(ks[5], (1, feature_dim), jnp.float32, -scale, scale),
        })
    return params


# ----------------------------------- main -----------------------------------

if __name__ == "__main__":
    B, T, D = 2, 16, 32
    temporal_window_list = [8, 16]

    key = jax.random.PRNGKey(0)
    k_feat, k_param = jax.random.split(key)
    feat = jax.random.normal(k_feat, (B, T, D), dtype=jnp.float32)
    params = init_params(k_param, D, len(temporal_window_list))

    out = mwtf_forward(feat, params, temporal_window_list)
    out = jax.block_until_ready(out)

    ref = mwtf_ref(feat, params, temporal_window_list)
    assert out.shape == (B, T, D * len(temporal_window_list)), out.shape
    # approx reciprocal (EUP) in both softmaxes -> slightly looser tolerance.
    max_err = float(jnp.max(jnp.abs(out - ref)))
    assert jnp.allclose(out, ref, rtol=5e-3, atol=5e-3), max_err

    print("KERNEL_OK")
</pallas_src>

<mosaic_0001>
module attributes {stable_mosaic.version = 11 : i64} {
  func.func @_mwtf_kernel(%arg0: i32, %arg1: memref<2x16x32xf32, #tpu.memory_space<vmem>>, %arg2: memref<2x32x96xf32, #tpu.memory_space<vmem>>, %arg3: memref<2x1x96xf32, #tpu.memory_space<vmem>>, %arg4: memref<2x16x64xf32, #tpu.memory_space<vmem>>) attributes {dimension_semantics = [#tpu.dimension_semantics<parallel>], iteration_bounds = array<i64: 1>, scalar_prefetch = 0 : i64, scratch_operands = 0 : i64, tpu.core_type = #tpu.core_type<tc>, window_params = [{transform_indices = @transform_0, window_bounds = array<i64: 2, 16, 32>}, {pipeline_mode = #tpu.pipeline_mode<synchronous>, transform_indices = @transform_1, window_bounds = array<i64: 2, 32, 96>}, {pipeline_mode = #tpu.pipeline_mode<synchronous>, transform_indices = @transform_2, window_bounds = array<i64: 2, 1, 96>}, {transform_indices = @transform_3, window_bounds = array<i64: 2, 16, 64>}]} {
    %c0 = arith.constant 0 : index
    %c0_0 = arith.constant 0 : index
    %c0_1 = arith.constant 0 : index
    %0 = vector.load %arg2[%c0, %c0_0, %c0_1] : memref<2x32x96xf32, #tpu.memory_space<vmem>>, vector<1x32x96xf32>
    %1 = vector.shape_cast %0 : vector<1x32x96xf32> to vector<32x96xf32>
    %c0_2 = arith.constant 0 : index
    %c0_3 = arith.constant 0 : index
    %c0_4 = arith.constant 0 : index
    %2 = vector.load %arg3[%c0_2, %c0_3, %c0_4] : memref<2x1x96xf32, #tpu.memory_space<vmem>>, vector<1x1x96xf32>
    %3 = vector.shape_cast %2 : vector<1x1x96xf32> to vector<1x96xf32>
    %c0_5 = arith.constant 0 : index
    %c0_6 = arith.constant 0 : index
    %c0_7 = arith.constant 0 : index
    %4 = vector.load %arg1[%c0_5, %c0_6, %c0_7] : memref<2x16x32xf32, #tpu.memory_space<vmem>>, vector<2x8x32xf32>
    %5 = arith.mulf %4, %4 : vector<2x8x32xf32>
    %cst = arith.constant dense<0.000000e+00> : vector<2x32xf32>
    %6 = vector.multi_reduction <add>, %5, %cst [1] : vector<2x8x32xf32> to vector<2x32xf32>
    %7 = vector.shape_cast %6 : vector<2x32xf32> to vector<2x1x32xf32>
    %cst_8 = arith.constant 1.000000e-24 : f32
    %8 = vector.broadcast %cst_8 : f32 to vector<2x1x32xf32>
    %9 = arith.maximumf %7, %8 : vector<2x1x32xf32>
    %10 = math.rsqrt %9 : vector<2x1x32xf32>
    %11 = vector.broadcast %10 : vector<2x1x32xf32> to vector<2x8x32xf32>
    %12 = arith.mulf %4, %11 : vector<2x8x32xf32>
    %13 = vector.shape_cast %12 : vector<2x8x32xf32> to vector<16x32xf32>
    %cst_9 = arith.constant dense<0.000000e+00> : vector<16x96xf32>
    %14 = tpu.matmul %13, %1, %cst_9 {dimension_numbers = #tpu.dot_dimension_numbers<[1], [0], [0], [1], [0, 0, 1, 1], [], []>} : vector<16x32xf32>, vector<32x96xf32>, vector<16x96xf32> -> vector<16x96xf32>
    %15 = vector.broadcast %3 : vector<1x96xf32> to vector<16x96xf32>
    %16 = arith.addf %14, %15 : vector<16x96xf32>
    %17 = vector.extract_strided_slice %16 {offsets = [0, 0], sizes = [16, 32], strides = [1, 1]} : vector<16x96xf32> to vector<16x32xf32>
    %18 = vector.shape_cast %17 : vector<16x32xf32> to vector<2x8x32xf32>
    %19 = vector.extract_strided_slice %16 {offsets = [0, 32], sizes = [16, 32], strides = [1, 1]} : vector<16x96xf32> to vector<16x32xf32>
    %20 = vector.shape_cast %19 : vector<16x32xf32> to vector<2x8x32xf32>
    %21 = vector.extract_strided_slice %16 {offsets = [0, 64], sizes = [16, 32], strides = [1, 1]} : vector<16x96xf32> to vector<16x32xf32>
    %22 = vector.shape_cast %21 : vector<16x32xf32> to vector<2x8x32xf32>
    %cst_10 = arith.constant 0.176776692 : f32
    %23 = vector.broadcast %cst_10 : f32 to vector<2x8x32xf32>
    %24 = arith.mulf %18, %23 : vector<2x8x32xf32>
    "tpu.trace_start"() <{level = 10 : i32, message = "bwd,bvd->bwv"}> : () -> ()
    %cst_11 = arith.constant dense<0.000000e+00> : vector<2x8x8xf32>
    %25 = tpu.matmul %24, %20, %cst_11 {dimension_numbers = #tpu.dot_dimension_numbers<[2], [2], [1], [1], [0, 0, 0, 1, 1, 1], [0], [0]>} : vector<2x8x32xf32>, vector<2x8x32xf32>, vector<2x8x8xf32> -> vector<2x8x8xf32>
    "tpu.trace_stop"() : () -> ()
    %cst_12 = arith.constant dense<0xFF800000> : vector<2x8xf32>
    %26 = vector.multi_reduction <maximumf>, %25, %cst_12 [1] : vector<2x8x8xf32> to vector<2x8xf32>
    %27 = vector.shape_cast %26 : vector<2x8xf32> to vector<2x1x8xf32>
    %28 = vector.broadcast %27 : vector<2x1x8xf32> to vector<2x8x8xf32>
    %29 = arith.subf %25, %28 : vector<2x8x8xf32>
    %30 = math.exp %29 : vector<2x8x8xf32>
    %cst_13 = arith.constant dense<0.000000e+00> : vector<2x8xf32>
    %31 = vector.multi_reduction <add>, %30, %cst_13 [1] : vector<2x8x8xf32> to vector<2x8xf32>
    %32 = vector.shape_cast %31 : vector<2x8xf32> to vector<2x1x8xf32>
    %33 = tpu.reciprocal %32 {approx = true} : vector<2x1x8xf32> -> vector<2x1x8xf32>
    %34 = vector.broadcast %33 : vector<2x1x8xf32> to vector<2x8x8xf32>
    %35 = arith.mulf %30, %34 : vector<2x8x8xf32>
    %cst_14 = arith.constant 0.353553385 : f32
    %36 = vector.broadcast %cst_14 : f32 to vector<2x8x32xf32>
    %37 = arith.mulf %20, %36 : vector<2x8x32xf32>
    "tpu.trace_start"() <{level = 10 : i32, message = "bwd,bwe->bde"}> : () -> ()
    %cst_15 = arith.constant dense<0.000000e+00> : vector<2x32x32xf32>
    %38 = tpu.matmul %37, %18, %cst_15 {dimension_numbers = #tpu.dot_dimension_numbers<[1], [1], [2], [2], [0, 0, 0, 2, 1, 2], [0], [0]>} : vector<2x8x32xf32>, vector<2x8x32xf32>, vector<2x32x32xf32> -> vector<2x32x32xf32>
    "tpu.trace_stop"() : () -> ()
    %cst_16 = arith.constant dense<0xFF800000> : vector<32x32xf32>
    %39 = vector.multi_reduction <maximumf>, %38, %cst_16 [0] : vector<2x32x32xf32> to vector<32x32xf32>
    %40 = vector.shape_cast %39 : vector<32x32xf32> to vector<1x32x32xf32>
    %41 = vector.broadcast %40 : vector<1x32x32xf32> to vector<2x32x32xf32>
    %42 = arith.subf %38, %41 : vector<2x32x32xf32>
    %43 = math.exp %42 : vector<2x32x32xf32>
    %cst_17 = arith.constant dense<0.000000e+00> : vector<32x32xf32>
    %44 = vector.multi_reduction <add>, %43, %cst_17 [0] : vector<2x32x32xf32> to vector<32x32xf32>
    %45 = vector.shape_cast %44 : vector<32x32xf32> to vector<1x32x32xf32>
    %46 = tpu.reciprocal %45 {approx = true} : vector<1x32x32xf32> -> vector<1x32x32xf32>
    %47 = vector.broadcast %46 : vector<1x32x32xf32> to vector<2x32x32xf32>
    %48 = arith.mulf %43, %47 : vector<2x32x32xf32>
    "tpu.trace_start"() <{level = 10 : i32, message = "bwv,bvd->bwd"}> : () -> ()
    %cst_18 = arith.constant dense<0.000000e+00> : vector<2x8x32xf32>
    %49 = tpu.matmul %35, %22, %cst_18 {dimension_numbers = #tpu.dot_dimension_numbers<[2], [1], [1], [2], [0, 0, 0, 1, 1, 2], [0], [0]>} : vector<2x8x8xf32>, vector<2x8x32xf32>, vector<2x8x32xf32> -> vector<2x8x32xf32>
    "tpu.trace_stop"() : () -> ()
    "tpu.trace_start"() <{level = 10 : i32, message = "bwd,bde->bwe"}> : () -> ()
    %cst_19 = arith.constant dense<0.000000e+00> : vector<2x8x32xf32>
    %50 = tpu.matmul %49, %48, %cst_19 {dimension_numbers = #tpu.dot_dimension_numbers<[2], [1], [1], [2], [0, 0, 0, 1, 1, 2], [0], [0]>} : vector<2x8x32xf32>, vector<2x32x32xf32>, vector<2x8x32xf32> -> vector<2x8x32xf32>
    "tpu.trace_stop"() : () -> ()
    %c0_20 = arith.constant 0 : index
    %c0_21 = arith.constant 0 : index
    %c0_22 = arith.constant 0 : index
    %51 = vector.load %arg4[%c0_20, %c0_21, %c0_22] : memref<2x16x64xf32, #tpu.memory_space<vmem>>, vector<2x8x32xf32>
    tpu.vector_store %arg4[%c0_20, %c0_21, %c0_22], %50 {strides = array<i32>} : memref<2x16x64xf32, #tpu.memory_space<vmem>>, vector<2x8x32xf32>,
    %c0_23 = arith.constant 0 : index
    %c8 = arith.constant 8 : index
    %c0_24 = arith.constant 0 : index
    %52 = vector.load %arg1[%c0_23, %c8, %c0_24] : memref<2x16x32xf32, #tpu.memory_space<vmem>>, vector<2x8x32xf32>
    %53 = arith.mulf %52, %52 : vector<2x8x32xf32>
    %cst_25 = arith.constant dense<0.000000e+00> : vector<2x32xf32>
    %54 = vector.multi_reduction <add>, %53, %cst_25 [1] : vector<2x8x32xf32> to vector<2x32xf32>
    %55 = vector.shape_cast %54 : vector<2x32xf32> to vector<2x1x32xf32>
    %cst_26 = arith.constant 1.000000e-24 : f32
    %56 = vector.broadcast %cst_26 : f32 to vector<2x1x32xf32>
    %57 = arith.maximumf %55, %56 : vector<2x1x32xf32>
    %58 = math.rsqrt %57 : vector<2x1x32xf32>
    %59 = vector.broadcast %58 : vector<2x1x32xf32> to vector<2x8x32xf32>
    %60 = arith.mulf %52, %59 : vector<2x8x32xf32>
    %61 = vector.shape_cast %60 : vector<2x8x32xf32> to vector<16x32xf32>
    %cst_27 = arith.constant dense<0.000000e+00> : vector<16x96xf32>
    %62 = tpu.matmul %61, %1, %cst_27 {dimension_numbers = #tpu.dot_dimension_numbers<[1], [0], [0], [1], [0, 0, 1, 1], [], []>} : vector<16x32xf32>, vector<32x96xf32>, vector<16x96xf32> -> vector<16x96xf32>
    %63 = vector.broadcast %3 : vector<1x96xf32> to vector<16x96xf32>
    %64 = arith.addf %62, %63 : vector<16x96xf32>
    %65 = vector.extract_strided_slice %64 {offsets = [0, 0], sizes = [16, 32], strides = [1, 1]} : vector<16x96xf32> to vector<16x32xf32>
    %66 = vector.shape_cast %65 : vector<16x32xf32> to vector<2x8x32xf32>
    %67 = vector.extract_strided_slice %64 {offsets = [0, 32], sizes = [16, 32], strides = [1, 1]} : vector<16x96xf32> to vector<16x32xf32>
    %68 = vector.shape_cast %67 : vector<16x32xf32> to vector<2x8x32xf32>
    %69 = vector.extract_strided_slice %64 {offsets = [0, 64], sizes = [16, 32], strides = [1, 1]} : vector<16x96xf32> to vector<16x32xf32>
    %70 = vector.shape_cast %69 : vector<16x32xf32> to vector<2x8x32xf32>
    %cst_28 = arith.constant 0.176776692 : f32
    %71 = vector.broadcast %cst_28 : f32 to vector<2x8x32xf32>
    %72 = arith.mulf %66, %71 : vector<2x8x32xf32>
    "tpu.trace_start"() <{level = 10 : i32, message = "bwd,bvd->bwv"}> : () -> ()
    %cst_29 = arith.constant dense<0.000000e+00> : vector<2x8x8xf32>
    %73 = tpu.matmul %72, %68, %cst_29 {dimension_numbers = #tpu.dot_dimension_numbers<[2], [2], [1], [1], [0, 0, 0, 1, 1, 1], [0], [0]>} : vector<2x8x32xf32>, vector<2x8x32xf32>, vector<2x8x8xf32> -> vector<2x8x8xf32>
    "tpu.trace_stop"() : () -> ()
    %cst_30 = arith.constant dense<0xFF800000> : vector<2x8xf32>
    %74 = vector.multi_reduction <maximumf>, %73, %cst_30 [1] : vector<2x8x8xf32> to vector<2x8xf32>
    %75 = vector.shape_cast %74 : vector<2x8xf32> to vector<2x1x8xf32>
    %76 = vector.broadcast %75 : vector<2x1x8xf32> to vector<2x8x8xf32>
    %77 = arith.subf %73, %76 : vector<2x8x8xf32>
    %78 = math.exp %77 : vector<2x8x8xf32>
    %cst_31 = arith.constant dense<0.000000e+00> : vector<2x8xf32>
    %79 = vector.multi_reduction <add>, %78, %cst_31 [1] : vector<2x8x8xf32> to vector<2x8xf32>
    %80 = vector.shape_cast %79 : vector<2x8xf32> to vector<2x1x8xf32>
    %81 = tpu.reciprocal %80 {approx = true} : vector<2x1x8xf32> -> vector<2x1x8xf32>
    %82 = vector.broadcast %81 : vector<2x1x8xf32> to vector<2x8x8xf32>
    %83 = arith.mulf %78, %82 : vector<2x8x8xf32>
    %cst_32 = arith.constant 0.353553385 : f32
    %84 = vector.broadcast %cst_32 : f32 to vector<2x8x32xf32>
    %85 = arith.mulf %68, %84 : vector<2x8x32xf32>
    "tpu.trace_start"() <{level = 10 : i32, message = "bwd,bwe->bde"}> : () -> ()
    %cst_33 = arith.constant dense<0.000000e+00> : vector<2x32x32xf32>
    %86 = tpu.matmul %85, %66, %cst_33 {dimension_numbers = #tpu.dot_dimension_numbers<[1], [1], [2], [2], [0, 0, 0, 2, 1, 2], [0], [0]>} : vector<2x8x32xf32>, vector<2x8x32xf32>, vector<2x32x32xf32> -> vector<2x32x32xf32>
    "tpu.trace_stop"() : () -> ()
    %cst_34 = arith.constant dense<0xFF800000> : vector<32x32xf32>
    %87 = vector.multi_reduction <maximumf>, %86, %cst_34 [0] : vector<2x32x32xf32> to vector<32x32xf32>
    %88 = vector.shape_cast %87 : vector<32x32xf32> to vector<1x32x32xf32>
    %89 = vector.broadcast %88 : vector<1x32x32xf32> to vector<2x32x32xf32>
    %90 = arith.subf %86, %89 : vector<2x32x32xf32>
    %91 = math.exp %90 : vector<2x32x32xf32>
    %cst_35 = arith.constant dense<0.000000e+00> : vector<32x32xf32>
    %92 = vector.multi_reduction <add>, %91, %cst_35 [0] : vector<2x32x32xf32> to vector<32x32xf32>
    %93 = vector.shape_cast %92 : vector<32x32xf32> to vector<1x32x32xf32>
    %94 = tpu.reciprocal %93 {approx = true} : vector<1x32x32xf32> -> vector<1x32x32xf32>
    %95 = vector.broadcast %94 : vector<1x32x32xf32> to vector<2x32x32xf32>
    %96 = arith.mulf %91, %95 : vector<2x32x32xf32>
    "tpu.trace_start"() <{level = 10 : i32, message = "bwv,bvd->bwd"}> : () -> ()
    %cst_36 = arith.constant dense<0.000000e+00> : vector<2x8x32xf32>
    %97 = tpu.matmul %83, %70, %cst_36 {dimension_numbers = #tpu.dot_dimension_numbers<[2], [1], [1], [2], [0, 0, 0, 1, 1, 2], [0], [0]>} : vector<2x8x8xf32>, vector<2x8x32xf32>, vector<2x8x32xf32> -> vector<2x8x32xf32>
    "tpu.trace_stop"() : () -> ()
    "tpu.trace_start"() <{level = 10 : i32, message = "bwd,bde->bwe"}> : () -> ()
    %cst_37 = arith.constant dense<0.000000e+00> : vector<2x8x32xf32>
    %98 = tpu.matmul %97, %96, %cst_37 {dimension_numbers = #tpu.dot_dimension_numbers<[2], [1], [1], [2], [0, 0, 0, 1, 1, 2], [0], [0]>} : vector<2x8x32xf32>, vector<2x32x32xf32>, vector<2x8x32xf32> -> vector<2x8x32xf32>
    "tpu.trace_stop"() : () -> ()
    %c0_38 = arith.constant 0 : index
    %c8_39 = arith.constant 8 : index
    %c0_40 = arith.constant 0 : index
    %99 = vector.load %arg4[%c0_38, %c8_39, %c0_40] : memref<2x16x64xf32, #tpu.memory_space<vmem>>, vector<2x8x32xf32>
    tpu.vector_store %arg4[%c0_38, %c8_39, %c0_40], %98 {strides = array<i32>} : memref<2x16x64xf32, #tpu.memory_space<vmem>>, vector<2x8x32xf32>,
    %c1 = arith.constant 1 : index
    %c0_41 = arith.constant 0 : index
    %c0_42 = arith.constant 0 : index
    %100 = vector.load %arg2[%c1, %c0_41, %c0_42] : memref<2x32x96xf32, #tpu.memory_space<vmem>>, vector<1x32x96xf32>
    %101 = vector.shape_cast %100 : vector<1x32x96xf32> to vector<32x96xf32>
    %c1_43 = arith.constant 1 : index
    %c0_44 = arith.constant 0 : index
    %c0_45 = arith.constant 0 : index
    %102 = vector.load %arg3[%c1_43, %c0_44, %c0_45] : memref<2x1x96xf32, #tpu.memory_space<vmem>>, vector<1x1x96xf32>
    %103 = vector.shape_cast %102 : vector<1x1x96xf32> to vector<1x96xf32>
    %c0_46 = arith.constant 0 : index
    %c0_47 = arith.constant 0 : index
    %c0_48 = arith.constant 0 : index
    %104 = vector.load %arg1[%c0_46, %c0_47, %c0_48] : memref<2x16x32xf32, #tpu.memory_space<vmem>>, vector<2x16x32xf32>
    %105 = arith.mulf %104, %104 : vector<2x16x32xf32>
    %cst_49 = arith.constant dense<0.000000e+00> : vector<2x32xf32>
    %106 = vector.multi_reduction <add>, %105, %cst_49 [1] : vector<2x16x32xf32> to vector<2x32xf32>
    %107 = vector.shape_cast %106 : vector<2x32xf32> to vector<2x1x32xf32>
    %cst_50 = arith.constant 1.000000e-24 : f32
    %108 = vector.broadcast %cst_50 : f32 to vector<2x1x32xf32>
    %109 = arith.maximumf %107, %108 : vector<2x1x32xf32>
    %110 = math.rsqrt %109 : vector<2x1x32xf32>
    %111 = vector.broadcast %110 : vector<2x1x32xf32> to vector<2x16x32xf32>
    %112 = arith.mulf %104, %111 : vector<2x16x32xf32>
    %113 = vector.shape_cast %112 : vector<2x16x32xf32> to vector<32x32xf32>
    %cst_51 = arith.constant dense<0.000000e+00> : vector<32x96xf32>
    %114 = tpu.matmul %113, %101, %cst_51 {dimension_numbers = #tpu.dot_dimension_numbers<[1], [0], [0], [1], [0, 0, 1, 1], [], []>} : vector<32x32xf32>, vector<32x96xf32>, vector<32x96xf32> -> vector<32x96xf32>
    %115 = vector.broadcast %103 : vector<1x96xf32> to vector<32x96xf32>
    %116 = arith.addf %114, %115 : vector<32x96xf32>
    %117 = vector.extract_strided_slice %116 {offsets = [0, 0], sizes = [32, 32], strides = [1, 1]} : vector<32x96xf32> to vector<32x32xf32>
    %118 = vector.shape_cast %117 : vector<32x32xf32> to vector<2x16x32xf32>
    %119 = vector.extract_strided_slice %116 {offsets = [0, 32], sizes = [32, 32], strides = [1, 1]} : vector<32x96xf32> to vector<32x32xf32>
    %120 = vector.shape_cast %119 : vector<32x32xf32> to vector<2x16x32xf32>
    %121 = vector.extract_strided_slice %116 {offsets = [0, 64], sizes = [32, 32], strides = [1, 1]} : vector<32x96xf32> to vector<32x32xf32>
    %122 = vector.shape_cast %121 : vector<32x32xf32> to vector<2x16x32xf32>
    %cst_52 = arith.constant 0.176776692 : f32
    %123 = vector.broadcast %cst_52 : f32 to vector<2x16x32xf32>
    %124 = arith.mulf %118, %123 : vector<2x16x32xf32>
    "tpu.trace_start"() <{level = 10 : i32, message = "bwd,bvd->bwv"}> : () -> ()
    %cst_53 = arith.constant dense<0.000000e+00> : vector<2x16x16xf32>
    %125 = tpu.matmul %124, %120, %cst_53 {dimension_numbers = #tpu.dot_dimension_numbers<[2], [2], [1], [1], [0, 0, 0, 1, 1, 1], [0], [0]>} : vector<2x16x32xf32>, vector<2x16x32xf32>, vector<2x16x16xf32> -> vector<2x16x16xf32>
    "tpu.trace_stop"() : () -> ()
    %cst_54 = arith.constant dense<0xFF800000> : vector<2x16xf32>
    %126 = vector.multi_reduction <maximumf>, %125, %cst_54 [1] : vector<2x16x16xf32> to vector<2x16xf32>
    %127 = vector.shape_cast %126 : vector<2x16xf32> to vector<2x1x16xf32>
    %128 = vector.broadcast %127 : vector<2x1x16xf32> to vector<2x16x16xf32>
    %129 = arith.subf %125, %128 : vector<2x16x16xf32>
    %130 = math.exp %129 : vector<2x16x16xf32>
    %cst_55 = arith.constant dense<0.000000e+00> : vector<2x16xf32>
    %131 = vector.multi_reduction <add>, %130, %cst_55 [1] : vector<2x16x16xf32> to vector<2x16xf32>
    %132 = vector.shape_cast %131 : vector<2x16xf32> to vector<2x1x16xf32>
    %133 = tpu.reciprocal %132 {approx = true} : vector<2x1x16xf32> -> vector<2x1x16xf32>
    %134 = vector.broadcast %133 : vector<2x1x16xf32> to vector<2x16x16xf32>
    %135 = arith.mulf %130, %134 : vector<2x16x16xf32>
    %cst_56 = arith.constant 2.500000e-01 : f32
    %136 = vector.broadcast %cst_56 : f32 to vector<2x16x32xf32>
    %137 = arith.mulf %120, %136 : vector<2x16x32xf32>
    "tpu.trace_start"() <{level = 10 : i32, message = "bwd,bwe->bde"}> : () -> ()
    %cst_57 = arith.constant dense<0.000000e+00> : vector<2x32x32xf32>
    %138 = tpu.matmul %137, %118, %cst_57 {dimension_numbers = #tpu.dot_dimension_numbers<[1], [1], [2], [2], [0, 0, 0, 2, 1, 2], [0], [0]>} : vector<2x16x32xf32>, vector<2x16x32xf32>, vector<2x32x32xf32> -> vector<2x32x32xf32>
    "tpu.trace_stop"() : () -> ()
    %cst_58 = arith.constant dense<0xFF800000> : vector<32x32xf32>
    %139 = vector.multi_reduction <maximumf>, %138, %cst_58 [0] : vector<2x32x32xf32> to vector<32x32xf32>
    %140 = vector.shape_cast %139 : vector<32x32xf32> to vector<1x32x32xf32>
    %141 = vector.broadcast %140 : vector<1x32x32xf32> to vector<2x32x32xf32>
    %142 = arith.subf %138, %141 : vector<2x32x32xf32>
    %143 = math.exp %142 : vector<2x32x32xf32>
    %cst_59 = arith.constant dense<0.000000e+00> : vector<32x32xf32>
    %144 = vector.multi_reduction <add>, %143, %cst_59 [0] : vector<2x32x32xf32> to vector<32x32xf32>
    %145 = vector.shape_cast %144 : vector<32x32xf32> to vector<1x32x32xf32>
    %146 = tpu.reciprocal %145 {approx = true} : vector<1x32x32xf32> -> vector<1x32x32xf32>
    %147 = vector.broadcast %146 : vector<1x32x32xf32> to vector<2x32x32xf32>
    %148 = arith.mulf %143, %147 : vector<2x32x32xf32>
    "tpu.trace_start"() <{level = 10 : i32, message = "bwv,bvd->bwd"}> : () -> ()
    %cst_60 = arith.constant dense<0.000000e+00> : vector<2x16x32xf32>
    %149 = tpu.matmul %135, %122, %cst_60 {dimension_numbers = #tpu.dot_dimension_numbers<[2], [1], [1], [2], [0, 0, 0, 1, 1, 2], [0], [0]>} : vector<2x16x16xf32>, vector<2x16x32xf32>, vector<2x16x32xf32> -> vector<2x16x32xf32>
    "tpu.trace_stop"() : () -> ()
    "tpu.trace_start"() <{level = 10 : i32, message = "bwd,bde->bwe"}> : () -> ()
    %cst_61 = arith.constant dense<0.000000e+00> : vector<2x16x32xf32>
    %150 = tpu.matmul %149, %148, %cst_61 {dimension_numbers = #tpu.dot_dimension_numbers<[2], [1], [1], [2], [0, 0, 0, 1, 1, 2], [0], [0]>} : vector<2x16x32xf32>, vector<2x32x32xf32>, vector<2x16x32xf32> -> vector<2x16x32xf32>
    "tpu.trace_stop"() : () -> ()
    %c0_62 = arith.constant 0 : index
    %c0_63 = arith.constant 0 : index
    %c32 = arith.constant 32 : index
    %151 = vector.load %arg4[%c0_62, %c0_63, %c32] : memref<2x16x64xf32, #tpu.memory_space<vmem>>, vector<2x16x32xf32>
    tpu.vector_store %arg4[%c0_62, %c0_63, %c32], %150 {strides = array<i32>} : memref<2x16x64xf32, #tpu.memory_space<vmem>>, vector<2x16x32xf32>,
    return
  }
  func.func @transform_0(%arg0: i32) -> (i32, i32, i32) {
    %c0_i32 = arith.constant 0 : i32
    %c0_i32_0 = arith.constant 0 : i32
    %c0_i32_1 = arith.constant 0 : i32
    return %c0_i32, %arg0, %c0_i32_0 : i32, i32, i32
  }
  func.func @transform_1(%arg0: i32) -> (i32, i32, i32) {
    %c0_i32 = arith.constant 0 : i32
    %c0_i32_0 = arith.constant 0 : i32
    %c0_i32_1 = arith.constant 0 : i32
    %c0_i32_2 = arith.constant 0 : i32
    return %c0_i32, %c0_i32_0, %c0_i32_1 : i32, i32, i32
  }
  func.func @transform_2(%arg0: i32) -> (i32, i32, i32) {
    %c0_i32 = arith.constant 0 : i32
    %c0_i32_0 = arith.constant 0 : i32
    %c0_i32_1 = arith.constant 0 : i32
    %c0_i32_2 = arith.constant 0 : i32
    return %c0_i32, %c0_i32_0, %c0_i32_1 : i32, i32, i32
  }
  func.func @transform_3(%arg0: i32) -> (i32, i32, i32) {
    %c0_i32 = arith.constant 0 : i32
    %c0_i32_0 = arith.constant 0 : i32
    %c0_i32_1 = arith.constant 0 : i32
    return %c0_i32, %arg0, %c0_i32_0 : i32, i32, i32
  }
}

</mosaic_0001>

<llo_original>
// kernel: tpu_custom_call.1
$region0: #{tpu_custom_call.1}
  #allocation0 [shape = 'u32[]', space=smem, size = 0x4, offset = 0x4, fixed_abs, tag = 'smem constant byte address 0x4 - core index']
  #allocation1 [shape = 'u32[72,128]{1,0:T(1,128)}', space=vmem, size = 0x9000, scoped, tag = 'internal scratch']
  %s0 = inlined_call_operand.hbm [shape: f32[2,16,32], index: 0, kind: input, shape index: {}]
  %s1 = inlined_call_operand.hbm [shape: f32[2,32,96], index: 1, kind: input, shape index: {}]
  %s2 = inlined_call_operand.hbm [shape: f32[2,1,96], index: 2, kind: input, shape index: {}]
  %s3 = inlined_call_operand.hbm [shape: f32[2,16,64], index: 3, kind: output, shape index: {}]
  %s4 = sld [smem:[#allocation0]]
  $region34: #{tpu_custom_call.1} parent=0
    _
  %s6 = ssub.s32 1, %s4
  %s7 = scalar_select 0, %s6, %s4
  $region1: #{tpu_custom_call.1} parent=0
    #allocation2 [shape = 'u8[16384]{0}', space=vmem, size = 0x4000, scoped, tag = 'input window, operand 0, single buffered']
    #allocation3 [shape = 's32[1]{0}', space=sflag, size = 0x4, scoped, tag = 'scoped memory for tpu_custom_call.1']
    #allocation4 [shape = 's32[1]{0}', space=sflag, size = 0x4, scoped, tag = 'scoped memory for tpu_custom_call.1']
    #allocation5 [shape = 'u8[32768]{0}', space=vmem, size = 0x8000, scoped, tag = 'input window, operand 1, single buffered']
    #allocation6 [shape = 's32[1]{0}', space=sflag, size = 0x4, scoped, tag = 'scoped memory for tpu_custom_call.1']
    #allocation7 [shape = 'u8[1024]{0}', space=vmem, size = 0x400, scoped, tag = 'input window, operand 2, single buffered']
    #allocation8 [shape = 'u8[16384]{0}', space=vmem, size = 0x4000, scoped, tag = 'output window, operand 0, single buffered']
    %8 = vsyncpa [#allocation3], 0
    %9 = vsyncpa [#allocation6], 0
    %10 = vsyncpa [#allocation4], 0
    // Predicated region
    $region2: #{tpu_custom_call.1} parent=1 // pred_check
      _
    $region3: #{tpu_custom_call.1} parent=1 // pred_check_branch
      %12 = sbr.rel (0) target = $region5
    $region4: #{tpu_custom_call.1} parent=1 // pred_region
      %14 = vsyncadd [#allocation3], 0
      %s15 = sshll.u32 %s0, 4
      %s16 = int_to_ptr.hbm [resolvable:$true] %s15
      %s17 = sshll.u32 [#allocation2], 4
      %s18 = int_to_ptr.vmem [resolvable:$true] %s17
      %23 = dma.hbm_to_vmem [thread:$0]  %s16, 512, %s18, [#allocation3], 128, 128, 8
    $region5: #{tpu_custom_call.1} parent=1 // pred_fallthru
      _
    // Predicated region
    $region6: #{tpu_custom_call.1} parent=1 // pred_check
      _
    $region7: #{tpu_custom_call.1} parent=1 // pred_check_branch
      %25 = sbr.rel (0) target = $region9
    $region8: #{tpu_custom_call.1} parent=1 // pred_region
      %27 = vsyncadd [#allocation6], 0
      %s28 = sshll.u32 %s1, 4
      %s29 = int_to_ptr.hbm [resolvable:$true] %s28
      %s30 = sshll.u32 [#allocation5], 4
      %s31 = int_to_ptr.vmem [resolvable:$true] %s30
      %36 = dma.hbm_to_vmem [thread:$0]  %s29, 1024, %s31, [#allocation6], 128, 128, 8
    $region9: #{tpu_custom_call.1} parent=1 // pred_fallthru
      _
    // Predicated region
    $region10: #{tpu_custom_call.1} parent=1 // pred_check
      _
    $region11: #{tpu_custom_call.1} parent=1 // pred_check_branch
      %38 = sbr.rel (0) target = $region13
    $region12: #{tpu_custom_call.1} parent=1 // pred_region
      %40 = vsyncadd [#allocation6], 0
      %s41 = sshll.u32 %s2, 4
      %s42 = int_to_ptr.hbm [resolvable:$true] %s41
      %s43 = sshll.u32 [#allocation7], 4
      %s44 = int_to_ptr.vmem [resolvable:$true] %s43
      %49 = dma.hbm_to_vmem [thread:$0]  %s42, 32, %s44, [#allocation6], 16, 16, 1
    $region13: #{tpu_custom_call.1} parent=1 // pred_fallthru
      _
    // Predicated region
    $region14: #{tpu_custom_call.1} parent=1 // pred_check
      _
    $region15: #{tpu_custom_call.1} parent=1 // pred_check_branch
      %51 = sbr.rel (0) target = $region17
    $region16: #{tpu_custom_call.1} parent=1 // pred_region
      %53 = dma.done [#allocation3], 512
    $region17: #{tpu_custom_call.1} parent=1 // pred_fallthru
      _
    // Predicated region
    $region18: #{tpu_custom_call.1} parent=1 // pred_check
      _
    $region19: #{tpu_custom_call.1} parent=1 // pred_check_branch
      %55 = sbr.rel (0) target = $region21
    $region20: #{tpu_custom_call.1} parent=1 // pred_region
      %57 = dma.done [#allocation6], 1024
    $region21: #{tpu_custom_call.1} parent=1 // pred_fallthru
      _
    // Predicated region
    $region22: #{tpu_custom_call.1} parent=1 // pred_check
      _
    $region23: #{tpu_custom_call.1} parent=1 // pred_check_branch
      %59 = sbr.rel (0) target = $region25
    $region24: #{tpu_custom_call.1} parent=1 // pred_region
      %61 = dma.done [#allocation6], 32
    $region25: #{tpu_custom_call.1} parent=1 // pred_fallthru
      _
    %v62 = vld [vmem:[#allocation5] sm:$0xff]
    %v63 = vld [vmem:[#allocation5 + $0x8] sm:$0xff]
    %v64 = vld [vmem:[#allocation5 + $0x10] sm:$0xff]
    %v65 = vld [vmem:[#allocation5 + $0x18] sm:$0xff]
    %v66 = vld [vmem:[#allocation7] sm:$0x1]
    %v67 = vld [vmem:[#allocation2] sm:$0xff]
    %v68 = vld [vmem:[#allocation2 + $0x10] sm:$0xff]
    %v69 = vmul.f32 %v67, %v67
    %v70 = vmul.f32 %v68, %v68
    %vm71 = vcmask 261120
    %v72 = vsel %vm71, %v69, 0.0
    %v73 = vrot.slane %v72, 4
    %v74 = vadd.f32 %v72, %v73
    %v75 = vrot.slane %v74, 2
    %v76 = vadd.f32 %v74, %v75
    %v77 = vrot.slane %v76, 1
    %v78 = vadd.f32 %v76, %v77
    %v79 = vsel %vm71, %v70, 0.0
    %v80 = vrot.slane %v79, 4
    %v81 = vadd.f32 %v79, %v80
    %v82 = vrot.slane %v81, 2
    %v83 = vadd.f32 %v81, %v82
    %v84 = vrot.slane %v83, 1
    %v85 = vadd.f32 %v83, %v84
    %v86 = vmax.f32 %v78, 1e-24
    %v87 = vmax.f32 %v85, 1e-24
    %v88 = vrsqrt.pop %v86
    %v89 = vmul.f32 %v88, %v86
    %v90 = vmul.f32 %v89, %v88
    %v91 = vmul.f32 0.5, %v90
    %v92 = vsub.f32 1.5, %v91
    %v93 = vmul.f32 %v88, %v92
    %vm94 = vweird.f32 %v86
    %vm95 = vweird.f32 %v88
    %vm96 = vmor %vm94, %vm95
    %v97 = vsel %vm96, %v88, %v93
    %v98 = vrsqrt.pop %v87
    %v99 = vmul.f32 %v98, %v87
    %v100 = vmul.f32 %v99, %v98
    %v101 = vmul.f32 0.5, %v100
    %v102 = vsub.f32 1.5, %v101
    %v103 = vmul.f32 %v98, %v102
    %vm104 = vweird.f32 %v87
    %vm105 = vweird.f32 %v98
    %vm106 = vmor %vm104, %vm105
    %v107 = vsel %vm106, %v98, %v103
    %v108 = vmul.f32 %v67, %v97
    %v109 = vmul.f32 %v68, %v107
    %v111 = vperm.slane %v66, 0
    %v114 = vsel %vm71, %v108, 0
    %v117 = vsel %vm71, %v109, 0
    %119 = vmatpush.msra.mxu0 0.0
    %120 = vmatpush.msra.mxu0 0.0
    %121 = vmatpush.msra.mxu0 0.0
    %122 = vmatpush.msra.mxu0 0.0
    %123 = vmatpush.msra.mxu0 0.0
    %124 = vmatpush.msra.mxu0 0.0
    %125 = vmatpush.msra.mxu0 0.0
    %126 = vmatpush.msra.mxu0 0.0
    %127 = vmatpush.msra.mxu0 0.0
    %128 = vmatpush.msra.mxu0 0.0
    %129 = vmatpush.msra.mxu0 0.0
    %130 = vmatpush.msra.mxu0 0.0
    %131 = vmatpush.msra.mxu0 %v65
    %132 = vmatpush.msra.mxu0 %v64
    %133 = vmatpush.msra.mxu0 %v63
    %134 = vmatpush.msra.mxu0 %v62
    %135 = vmatmul.f32.gmra.mxu0 %v114
    %v136 = vpop.f32.mrf.mxu0
    %v137 = vadd.f32 %v111, %v136
    %138 = vmatmul.f32.gmra.mxu0 %v117
    %v139 = vpop.f32.mrf.mxu0
    %v140 = vadd.f32 %v111, %v139
    %141 = vdwg.mxu0
    %v142 = vmul.f32 %v137, 0.17677669
    %v143 = vmul.f32 %v140, 0.17677669
    %145 = vrot.lane.b32.xlu0 %v137, 96
    %v146 = vpop.permute.xlu0 %145
    %v148 = vsel %vm71, %v142, 0
    %v150 = vsel %vm71, %v146, 0
    %152 = vmatpush.xpose.msra.mxu0 0.0
    %153 = vmatpush.xpose.msra.mxu0 0.0
    %154 = vmatpush.xpose.msra.mxu0 0.0
    %155 = vmatpush.xpose.msra.mxu0 0.0
    %156 = vmatpush.xpose.msra.mxu0 0.0
    %157 = vmatpush.xpose.msra.mxu0 0.0
    %158 = vmatpush.xpose.msra.mxu0 0.0
    %159 = vmatpush.xpose.msra.mxu0 0.0
    %160 = vmatpush.xpose.msra.mxu0 0.0
    %161 = vmatpush.xpose.msra.mxu0 0.0
    %162 = vmatpush.xpose.msra.mxu0 0.0
    %163 = vmatpush.xpose.msra.mxu0 0.0
    %164 = vmatpush.xpose.msra.mxu0 0.0
    %165 = vmatpush.xpose.msra.mxu0 0.0
    %166 = vmatpush.xpose.msra.mxu0 0.0
    %167 = vmatpush.xpose.msra.mxu0 %v150
    %168 = vmatmul.f32.gmra.mxu0 %v148
    %v169 = vpop.f32.mrf.mxu0
    %v170 = vadd.f32 0.0, %v169
    %171 = vdwg.mxu0
    %173 = vrot.lane.b32.xlu0 %v140, 96
    %v174 = vpop.permute.xlu0 %173
    %v176 = vsel %vm71, %v143, 0
    %v178 = vsel %vm71, %v174, 0
    %180 = vmatpush.xpose.msra.mxu0 0.0
    %181 = vmatpush.xpose.msra.mxu0 0.0
    %182 = vmatpush.xpose.msra.mxu0 0.0
    %183 = vmatpush.xpose.msra.mxu0 0.0
    %184 = vmatpush.xpose.msra.mxu0 0.0
    %185 = vmatpush.xpose.msra.mxu0 0.0
    %186 = vmatpush.xpose.msra.mxu0 0.0
    %187 = vmatpush.xpose.msra.mxu0 0.0
    %188 = vmatpush.xpose.msra.mxu0 0.0
    %189 = vmatpush.xpose.msra.mxu0 0.0
    %190 = vmatpush.xpose.msra.mxu0 0.0
    %191 = vmatpush.xpose.msra.mxu0 0.0
    %192 = vmatpush.xpose.msra.mxu0 0.0
    %193 = vmatpush.xpose.msra.mxu0 0.0
    %194 = vmatpush.xpose.msra.mxu0 0.0
    %195 = vmatpush.xpose.msra.mxu0 %v178
    %196 = vmatmul.f32.gmra.mxu0 %v176
    %v197 = vpop.f32.mrf.mxu0
    %v198 = vadd.f32 0.0, %v197
    %199 = vdwg.mxu0
    %vm200 = vcmask 64512
    %v201 = vsel %vm200, %v170, -inf
    %v202 = vrot.slane %v201, 4
    %v203 = vmax.f32 %v201, %v202
    %v204 = vrot.slane %v203, 2
    %v205 = vmax.f32 %v203, %v204
    %v206 = vrot.slane %v205, 1
    %v207 = vmax.f32 %v205, %v206
    %v208 = vsel %vm200, %v198, -inf
    %v209 = vrot.slane %v208, 4
    %v210 = vmax.f32 %v208, %v209
    %v211 = vrot.slane %v210, 2
    %v212 = vmax.f32 %v210, %v211
    %v213 = vrot.slane %v212, 1
    %v214 = vmax.f32 %v212, %v213
    %v215 = vsub.f32 %v170, %v207
    %v216 = vsub.f32 %v198, %v214
    %v217 = vmul.f32 %v215, 1.442695
    %v218 = vpow.pop %v217
    %v219 = vmul.f32 %v216, 1.442695
    %v220 = vpow.pop %v219
    %v221 = vsel %vm200, %v218, 0.0
    %v222 = vrot.slane %v221, 4
    %v223 = vadd.f32 %v221, %v222
    %v224 = vrot.slane %v223, 2
    %v225 = vadd.f32 %v223, %v224
    %v226 = vrot.slane %v225, 1
    %v227 = vadd.f32 %v225, %v226
    %v228 = vsel %vm200, %v220, 0.0
    %v229 = vrot.slane %v228, 4
    %v230 = vadd.f32 %v228, %v229
    %v231 = vrot.slane %v230, 2
    %v232 = vadd.f32 %v230, %v231
    %v233 = vrot.slane %v232, 1
    %v234 = vadd.f32 %v232, %v233
    %v235 = vrcp.pop %v227
    %v236 = vrcp.pop %v234
    %v237 = vmul.f32 %v218, %v235
    %v238 = vmul.f32 %v220, %v236
    %v239 = vmul.f32 %v137, 0.35355338
    %v240 = vmul.f32 %v140, 0.35355338
    %242 = vrot.lane.b32.xlu0 %v239, 96
    %v243 = vpop.permute.xlu0 %242
    %245 = vxpose.xlu0.b32.start [1/16] %v243, 128
    %246 = vxpose.xlu0.b32.cont [2/16] 0.0, 128
    %247 = vxpose.xlu0.b32.cont [3/16] 0.0, 128
    %248 = vxpose.xlu0.b32.cont [4/16] 0.0, 128
    %249 = vxpose.xlu0.b32.cont [5/16] 0.0, 128
    %250 = vxpose.xlu0.b32.cont [6/16] 0.0, 128
    %251 = vxpose.xlu0.b32.cont [7/16] 0.0, 128
    %252 = vxpose.xlu0.b32.cont [8/16] 0.0, 128
    %253 = vxpose.xlu0.b32.cont [9/16] 0.0, 128
    %254 = vxpose.xlu0.b32.cont [10/16] 0.0, 128
    %255 = vxpose.xlu0.b32.cont [11/16] 0.0, 128
    %256 = vxpose.xlu0.b32.cont [12/16] 0.0, 128
    %257 = vxpose.xlu0.b32.cont [13/16] 0.0, 128
    %258 = vxpose.xlu0.b32.cont [14/16] 0.0, 128
    %259 = vxpose.xlu0.b32.cont [15/16] 0.0, 128
    %260 = vxpose.xlu0.b32.end [16/16] 0.0, 128
    %v261 = vpop.trf.xlu0
    %v262 = vpop.trf.xlu0
    %v263 = vpop.trf.xlu0
    %v264 = vpop.trf.xlu0
    %v265 = vpop.trf.xlu0
    %v266 = vpop.trf.xlu0
    %v267 = vpop.trf.xlu0
    %v268 = vpop.trf.xlu0
    %v269 = vpop.trf.xlu0
    %v270 = vpop.trf.xlu0
    %v271 = vpop.trf.xlu0
    %v272 = vpop.trf.xlu0
    %v273 = vpop.trf.xlu0
    %v274 = vpop.trf.xlu0
    %v275 = vpop.trf.xlu0
    %v276 = vpop.trf.xlu0
    %v278 = vsel %vm200, %v261, 0
    %v281 = vsel %vm200, %v262, 0
    %v284 = vsel %vm200, %v263, 0
    %v287 = vsel %vm200, %v264, 0
    %289 = vmatpush.msra.mxu0 0.0
    %290 = vmatpush.msra.mxu0 0.0
    %291 = vmatpush.msra.mxu0 0.0
    %292 = vmatpush.msra.mxu0 0.0
    %293 = vmatpush.msra.mxu0 0.0
    %294 = vmatpush.msra.mxu0 0.0
    %295 = vmatpush.msra.mxu0 0.0
    %296 = vmatpush.msra.mxu0 0.0
    %297 = vmatpush.msra.mxu0 0.0
    %298 = vmatpush.msra.mxu0 0.0
    %299 = vmatpush.msra.mxu0 0.0
    %300 = vmatpush.msra.mxu0 0.0
    %301 = vmatpush.msra.mxu0 0.0
    %302 = vmatpush.msra.mxu0 0.0
    %303 = vmatpush.msra.mxu0 0.0
    %304 = vmatpush.msra.mxu0 %v137
    %305 = vmatmul.f32.gmra.mxu0 %v278
    %v306 = vpop.f32.mrf.mxu0
    %v307 = vadd.f32 0.0, %v306
    %308 = vmatmul.f32.gmra.mxu0 %v281
    %v309 = vpop.f32.mrf.mxu0
    %v310 = vadd.f32 0.0, %v309
    %311 = vmatmul.f32.gmra.mxu0 %v284
    %v312 = vpop.f32.mrf.mxu0
    %v313 = vadd.f32 0.0, %v312
    %314 = vmatmul.f32.gmra.mxu0 %v287
    %v315 = vpop.f32.mrf.mxu0
    %v316 = vadd.f32 0.0, %v315
    %317 = vdwg.mxu0
    %319 = vrot.lane.b32.xlu0 %v240, 96
    %v320 = vpop.permute.xlu0 %319
    %322 = vxpose.xlu0.b32.start [1/16] %v320, 128
    %323 = vxpose.xlu0.b32.cont [2/16] 0.0, 128
    %324 = vxpose.xlu0.b32.cont [3/16] 0.0, 128
    %325 = vxpose.xlu0.b32.cont [4/16] 0.0, 128
    %326 = vxpose.xlu0.b32.cont [5/16] 0.0, 128
    %327 = vxpose.xlu0.b32.cont [6/16] 0.0, 128
    %328 = vxpose.xlu0.b32.cont [7/16] 0.0, 128
    %329 = vxpose.xlu0.b32.cont [8/16] 0.0, 128
    %330 = vxpose.xlu0.b32.cont [9/16] 0.0, 128
    %331 = vxpose.xlu0.b32.cont [10/16] 0.0, 128
    %332 = vxpose.xlu0.b32.cont [11/16] 0.0, 128
    %333 = vxpose.xlu0.b32.cont [12/16] 0.0, 128
    %334 = vxpose.xlu0.b32.cont [13/16] 0.0, 128
    %335 = vxpose.xlu0.b32.cont [14/16] 0.0, 128
    %336 = vxpose.xlu0.b32.cont [15/16] 0.0, 128
    %337 = vxpose.xlu0.b32.end [16/16] 0.0, 128
    %v338 = vpop.trf.xlu0
    %v339 = vpop.trf.xlu0
    %v340 = vpop.trf.xlu0
    %v341 = vpop.trf.xlu0
    %v342 = vpop.trf.xlu0
    %v343 = vpop.trf.xlu0
    %v344 = vpop.trf.xlu0
    %v345 = vpop.trf.xlu0
    %v346 = vpop.trf.xlu0
    %v347 = vpop.trf.xlu0
    %v348 = vpop.trf.xlu0
    %v349 = vpop.trf.xlu0
    %v350 = vpop.trf.xlu0
    %v351 = vpop.trf.xlu0
    %v352 = vpop.trf.xlu0
    %v353 = vpop.trf.xlu0
    %v355 = vsel %vm200, %v338, 0
    %v358 = vsel %vm200, %v339, 0
    %v361 = vsel %vm200, %v340, 0
    %v364 = vsel %vm200, %v341, 0
    %366 = vmatpush.msra.mxu0 0.0
    %367 = vmatpush.msra.mxu0 0.0
    %368 = vmatpush.msra.mxu0 0.0
    %369 = vmatpush.msra.mxu0 0.0
    %370 = vmatpush.msra.mxu0 0.0
    %371 = vmatpush.msra.mxu0 0.0
    %372 = vmatpush.msra.mxu0 0.0
    %373 = vmatpush.msra.mxu0 0.0
    %374 = vmatpush.msra.mxu0 0.0
    %375 = vmatpush.msra.mxu0 0.0
    %376 = vmatpush.msra.mxu0 0.0
    %377 = vmatpush.msra.mxu0 0.0
    %378 = vmatpush.msra.mxu0 0.0
    %379 = vmatpush.msra.mxu0 0.0
    %380 = vmatpush.msra.mxu0 0.0
    %381 = vmatpush.msra.mxu0 %v140
    %382 = vmatmul.f32.gmra.mxu0 %v355
    %v383 = vpop.f32.mrf.mxu0
    %v384 = vadd.f32 0.0, %v383
    %385 = vmatmul.f32.gmra.mxu0 %v358
    %v386 = vpop.f32.mrf.mxu0
    %v387 = vadd.f32 0.0, %v386
    %388 = vmatmul.f32.gmra.mxu0 %v361
    %v389 = vpop.f32.mrf.mxu0
    %v390 = vadd.f32 0.0, %v389
    %391 = vmatmul.f32.gmra.mxu0 %v364
    %v392 = vpop.f32.mrf.mxu0
    %v393 = vadd.f32 0.0, %v392
    %394 = vdwg.mxu0
    %v395 = vsel %vm71, %v307, -inf
    %v396 = vsel %vm71, %v384, -inf
    %v397 = vmax.f32 %v395, %v396
    %v398 = vsel %vm71, %v310, -inf
    %v399 = vsel %vm71, %v387, -inf
    %v400 = vmax.f32 %v398, %v399
    %v401 = vsel %vm71, %v313, -inf
    %v402 = vsel %vm71, %v390, -inf
    %v403 = vmax.f32 %v401, %v402
    %v404 = vsel %vm71, %v316, -inf
    %v405 = vsel %vm71, %v393, -inf
    %v406 = vmax.f32 %v404, %v405
    %v407 = vsub.f32 %v307, %v397
    %v408 = vsub.f32 %v310, %v400
    %v409 = vsub.f32 %v313, %v403
    %v410 = vsub.f32 %v316, %v406
    %v411 = vsub.f32 %v384, %v397
    %v412 = vsub.f32 %v387, %v400
    %v413 = vsub.f32 %v390, %v403
    %v414 = vsub.f32 %v393, %v406
    %v415 = vmul.f32 %v407, 1.442695
    %v416 = vpow.pop %v415
    %v417 = vmul.f32 %v408, 1.442695
    %v418 = vpow.pop %v417
    %v419 = vmul.f32 %v409, 1.442695
    %v420 = vpow.pop %v419
    %v421 = vmul.f32 %v410, 1.442695
    %v422 = vpow.pop %v421
    %v423 = vmul.f32 %v411, 1.442695
    %v424 = vpow.pop %v423
    %v425 = vmul.f32 %v412, 1.442695
    %v426 = vpow.pop %v425
    %v427 = vmul.f32 %v413, 1.442695
    %v428 = vpow.pop %v427
    %v429 = vmul.f32 %v414, 1.442695
    %v430 = vpow.pop %v429
    %v431 = vsel %vm71, %v416, 0.0
    %v432 = vsel %vm71, %v424, 0.0
    %v433 = vadd.f32 %v431, %v432
    %v434 = vsel %vm71, %v418, 0.0
    %v435 = vsel %vm71, %v426, 0.0
    %v436 = vadd.f32 %v434, %v435
    %v437 = vsel %vm71, %v420, 0.0
    %v438 = vsel %vm71, %v428, 0.0
    %v439 = vadd.f32 %v437, %v438
    %v440 = vsel %vm71, %v422, 0.0
    %v441 = vsel %vm71, %v430, 0.0
    %v442 = vadd.f32 %v440, %v441
    %v443 = vrcp.pop %v433
    %v444 = vrcp.pop %v436
    %v445 = vrcp.pop %v439
    %v446 = vrcp.pop %v442
    %v447 = vmul.f32 %v416, %v443
    %v448 = vmul.f32 %v418, %v444
    %v449 = vmul.f32 %v420, %v445
    %v450 = vmul.f32 %v422, %v446
    %v451 = vmul.f32 %v424, %v443
    %v452 = vmul.f32 %v426, %v444
    %v453 = vmul.f32 %v428, %v445
    %v454 = vmul.f32 %v430, %v446
    %455 = vrot.lane.b32.xlu0 %v137, 64
    %v456 = vpop.permute.xlu0 %455
    %v459 = vsel %vm200, %v237, 0
    %461 = vmatpush.msra.mxu0 0.0
    %462 = vmatpush.msra.mxu0 0.0
    %463 = vmatpush.msra.mxu0 0.0
    %464 = vmatpush.msra.mxu0 0.0
    %465 = vmatpush.msra.mxu0 0.0
    %466 = vmatpush.msra.mxu0 0.0
    %467 = vmatpush.msra.mxu0 0.0
    %468 = vmatpush.msra.mxu0 0.0
    %469 = vmatpush.msra.mxu0 0.0
    %470 = vmatpush.msra.mxu0 0.0
    %471 = vmatpush.msra.mxu0 0.0
    %472 = vmatpush.msra.mxu0 0.0
    %473 = vmatpush.msra.mxu0 0.0
    %474 = vmatpush.msra.mxu0 0.0
    %475 = vmatpush.msra.mxu0 0.0
    %476 = vmatpush.msra.mxu0 %v456
    %477 = vmatmul.f32.gmra.mxu0 %v459
    %v478 = vpop.f32.mrf.mxu0
    %v479 = vadd.f32 0.0, %v478
    %480 = vdwg.mxu0
    %481 = vrot.lane.b32.xlu0 %v140, 64
    %v482 = vpop.permute.xlu0 %481
    %v485 = vsel %vm200, %v238, 0
    %487 = vmatpush.msra.mxu0 0.0
    %488 = vmatpush.msra.mxu0 0.0
    %489 = vmatpush.msra.mxu0 0.0
    %490 = vmatpush.msra.mxu0 0.0
    %491 = vmatpush.msra.mxu0 0.0
    %492 = vmatpush.msra.mxu0 0.0
    %493 = vmatpush.msra.mxu0 0.0
    %494 = vmatpush.msra.mxu0 0.0
    %495 = vmatpush.msra.mxu0 0.0
    %496 = vmatpush.msra.mxu0 0.0
    %497 = vmatpush.msra.mxu0 0.0
    %498 = vmatpush.msra.mxu0 0.0
    %499 = vmatpush.msra.mxu0 0.0
    %500 = vmatpush.msra.mxu0 0.0
    %501 = vmatpush.msra.mxu0 0.0
    %502 = vmatpush.msra.mxu0 %v482
    %503 = vmatmul.f32.gmra.mxu0 %v485
    %v504 = vpop.f32.mrf.mxu0
    %v505 = vadd.f32 0.0, %v504
    %506 = vdwg.mxu0
    %v508 = vsel %vm71, %v479, 0
    %510 = vmatpush.msra.mxu0 0.0
    %511 = vmatpush.msra.mxu0 0.0
    %512 = vmatpush.msra.mxu0 0.0
    %513 = vmatpush.msra.mxu0 0.0
    %514 = vmatpush.msra.mxu0 0.0
    %515 = vmatpush.msra.mxu0 0.0
    %516 = vmatpush.msra.mxu0 0.0
    %517 = vmatpush.msra.mxu0 0.0
    %518 = vmatpush.msra.mxu0 0.0
    %519 = vmatpush.msra.mxu0 0.0
    %520 = vmatpush.msra.mxu0 0.0
    %521 = vmatpush.msra.mxu0 0.0
    %522 = vmatpush.msra.mxu0 %v450
    %523 = vmatpush.msra.mxu0 %v449
    %524 = vmatpush.msra.mxu0 %v448
    %525 = vmatpush.msra.mxu0 %v447
    %526 = vmatmul.f32.gmra.mxu0 %v508
    %v527 = vpop.f32.mrf.mxu0
    %v528 = vadd.f32 0.0, %v527
    %529 = vdwg.mxu0
    %v531 = vsel %vm71, %v505, 0
    %533 = vmatpush.msra.mxu0 0.0
    %534 = vmatpush.msra.mxu0 0.0
    %535 = vmatpush.msra.mxu0 0.0
    %536 = vmatpush.msra.mxu0 0.0
    %537 = vmatpush.msra.mxu0 0.0
    %538 = vmatpush.msra.mxu0 0.0
    %539 = vmatpush.msra.mxu0 0.0
    %540 = vmatpush.msra.mxu0 0.0
    %541 = vmatpush.msra.mxu0 0.0
    %542 = vmatpush.msra.mxu0 0.0
    %543 = vmatpush.msra.mxu0 0.0
    %544 = vmatpush.msra.mxu0 0.0
    %545 = vmatpush.msra.mxu0 %v454
    %546 = vmatpush.msra.mxu0 %v453
    %547 = vmatpush.msra.mxu0 %v452
    %548 = vmatpush.msra.mxu0 %v451
    %549 = vmatmul.f32.gmra.mxu0 %v531
    %v550 = vpop.f32.mrf.mxu0
    %v551 = vadd.f32 0.0, %v550
    %552 = vdwg.mxu0
    %553 = vst.msk [vmem:[#allocation8] sm:$0xff] %vm71, %v528
    %554 = vst.msk [vmem:[#allocation8 + $0x10] sm:$0xff] %vm71, %v551
    %v555 = vld [vmem:[#allocation2 + $0x8] sm:$0xff]
    %v556 = vld [vmem:[#allocation2 + $0x18] sm:$0xff]
    %v557 = vmul.f32 %v555, %v555
    %v558 = vmul.f32 %v556, %v556
    %v559 = vsel %vm71, %v557, 0.0
    %v560 = vrot.slane %v559, 4
    %v561 = vadd.f32 %v559, %v560
    %v562 = vrot.slane %v561, 2
    %v563 = vadd.f32 %v561, %v562
    %v564 = vrot.slane %v563, 1
    %v565 = vadd.f32 %v563, %v564
    %v566 = vsel %vm71, %v558, 0.0
    %v567 = vrot.slane %v566, 4
    %v568 = vadd.f32 %v566, %v567
    %v569 = vrot.slane %v568, 2
    %v570 = vadd.f32 %v568, %v569
    %v571 = vrot.slane %v570, 1
    %v572 = vadd.f32 %v570, %v571
    %v573 = vmax.f32 %v565, 1e-24
    %v574 = vmax.f32 %v572, 1e-24
    %v575 = vrsqrt.pop %v573
    %v576 = vmul.f32 %v575, %v573
    %v577 = vmul.f32 %v576, %v575
    %v578 = vmul.f32 0.5, %v577
    %v579 = vsub.f32 1.5, %v578
    %v580 = vmul.f32 %v575, %v579
    %vm581 = vweird.f32 %v573
    %vm582 = vweird.f32 %v575
    %vm583 = vmor %vm581, %vm582
    %v584 = vsel %vm583, %v575, %v580
    %v585 = vrsqrt.pop %v574
    %v586 = vmul.f32 %v585, %v574
    %v587 = vmul.f32 %v586, %v585
    %v588 = vmul.f32 0.5, %v587
    %v589 = vsub.f32 1.5, %v588
    %v590 = vmul.f32 %v585, %v589
    %vm591 = vweird.f32 %v574
    %vm592 = vweird.f32 %v585
    %vm593 = vmor %vm591, %vm592
    %v594 = vsel %vm593, %v585, %v590
    %v595 = vmul.f32 %v555, %v584
    %v596 = vmul.f32 %v556, %v594
    %v598 = vsel %vm71, %v595, 0
    %v601 = vsel %vm71, %v596, 0
    %603 = vmatpush.msra.mxu0 0.0
    %604 = vmatpush.msra.mxu0 0.0
    %605 = vmatpush.msra.mxu0 0.0
    %606 = vmatpush.msra.mxu0 0.0
    %607 = vmatpush.msra.mxu0 0.0
    %608 = vmatpush.msra.mxu0 0.0
    %609 = vmatpush.msra.mxu0 0.0
    %610 = vmatpush.msra.mxu0 0.0
    %611 = vmatpush.msra.mxu0 0.0
    %612 = vmatpush.msra.mxu0 0.0
    %613 = vmatpush.msra.mxu0 0.0
    %614 = vmatpush.msra.mxu0 0.0
    %615 = vmatpush.msra.mxu0 %v65
    %616 = vmatpush.msra.mxu0 %v64
    %617 = vmatpush.msra.mxu0 %v63
    %618 = vmatpush.msra.mxu0 %v62
    %619 = vmatmul.f32.gmra.mxu0 %v598
    %v620 = vpop.f32.mrf.mxu0
    %v621 = vadd.f32 %v111, %v620
    %622 = vmatmul.f32.gmra.mxu0 %v601
    %v623 = vpop.f32.mrf.mxu0
    %v624 = vadd.f32 %v111, %v623
    %625 = vdwg.mxu0
    %v626 = vmul.f32 %v621, 0.17677669
    %v627 = vmul.f32 %v624, 0.17677669
    %629 = vrot.lane.b32.xlu0 %v621, 96
    %v630 = vpop.permute.xlu0 %629
    %v632 = vsel %vm71, %v626, 0
    %v634 = vsel %vm71, %v630, 0
    %636 = vmatpush.xpose.msra.mxu0 0.0
    %637 = vmatpush.xpose.msra.mxu0 0.0
    %638 = vmatpush.xpose.msra.mxu0 0.0
    %639 = vmatpush.xpose.msra.mxu0 0.0
    %640 = vmatpush.xpose.msra.mxu0 0.0
    %641 = vmatpush.xpose.msra.mxu0 0.0
    %642 = vmatpush.xpose.msra.mxu0 0.0
    %643 = vmatpush.xpose.msra.mxu0 0.0
    %644 = vmatpush.xpose.msra.mxu0 0.0
    %645 = vmatpush.xpose.msra.mxu0 0.0
    %646 = vmatpush.xpose.msra.mxu0 0.0
    %647 = vmatpush.xpose.msra.mxu0 0.0
    %648 = vmatpush.xpose.msra.mxu0 0.0
    %649 = vmatpush.xpose.msra.mxu0 0.0
    %650 = vmatpush.xpose.msra.mxu0 0.0
    %651 = vmatpush.xpose.msra.mxu0 %v634
    %652 = vmatmul.f32.gmra.mxu0 %v632
    %v653 = vpop.f32.mrf.mxu0
    %v654 = vadd.f32 0.0, %v653
    %655 = vdwg.mxu0
    %657 = vrot.lane.b32.xlu0 %v624, 96
    %v658 = vpop.permute.xlu0 %657
    %v660 = vsel %vm71, %v627, 0
    %v662 = vsel %vm71, %v658, 0
    %664 = vmatpush.xpose.msra.mxu0 0.0
    %665 = vmatpush.xpose.msra.mxu0 0.0
    %666 = vmatpush.xpose.msra.mxu0 0.0
    %667 = vmatpush.xpose.msra.mxu0 0.0
    %668 = vmatpush.xpose.msra.mxu0 0.0
    %669 = vmatpush.xpose.msra.mxu0 0.0
    %670 = vmatpush.xpose.msra.mxu0 0.0
    %671 = vmatpush.xpose.msra.mxu0 0.0
    %672 = vmatpush.xpose.msra.mxu0 0.0
    %673 = vmatpush.xpose.msra.mxu0 0.0
    %674 = vmatpush.xpose.msra.mxu0 0.0
    %675 = vmatpush.xpose.msra.mxu0 0.0
    %676 = vmatpush.xpose.msra.mxu0 0.0
    %677 = vmatpush.xpose.msra.mxu0 0.0
    %678 = vmatpush.xpose.msra.mxu0 0.0
    %679 = vmatpush.xpose.msra.mxu0 %v662
    %680 = vmatmul.f32.gmra.mxu0 %v660
    %v681 = vpop.f32.mrf.mxu0
    %v682 = vadd.f32 0.0, %v681
    %683 = vdwg.mxu0
    %v684 = vsel %vm200, %v654, -inf
    %v685 = vrot.slane %v684, 4
    %v686 = vmax.f32 %v684, %v685
    %v687 = vrot.slane %v686, 2
    %v688 = vmax.f32 %v686, %v687
    %v689 = vrot.slane %v688, 1
    %v690 = vmax.f32 %v688, %v689
    %v691 = vsel %vm200, %v682, -inf
    %v692 = vrot.slane %v691, 4
    %v693 = vmax.f32 %v691, %v692
    %v694 = vrot.slane %v693, 2
    %v695 = vmax.f32 %v693, %v694
    %v696 = vrot.slane %v695, 1
    %v697 = vmax.f32 %v695, %v696
    %v698 = vsub.f32 %v654, %v690
    %v699 = vsub.f32 %v682, %v697
    %v700 = vmul.f32 %v698, 1.442695
    %v701 = vpow.pop %v700
    %v702 = vmul.f32 %v699, 1.442695
    %v703 = vpow.pop %v702
    %v704 = vsel %vm200, %v701, 0.0
    %v705 = vrot.slane %v704, 4
    %v706 = vadd.f32 %v704, %v705
    %v707 = vrot.slane %v706, 2
    %v708 = vadd.f32 %v706, %v707
    %v709 = vrot.slane %v708, 1
    %v710 = vadd.f32 %v708, %v709
    %v711 = vsel %vm200, %v703, 0.0
    %v712 = vrot.slane %v711, 4
    %v713 = vadd.f32 %v711, %v712
    %v714 = vrot.slane %v713, 2
    %v715 = vadd.f32 %v713, %v714
    %v716 = vrot.slane %v715, 1
    %v717 = vadd.f32 %v715, %v716
    %v718 = vrcp.pop %v710
    %v719 = vrcp.pop %v717
    %v720 = vmul.f32 %v701, %v718
    %v721 = vmul.f32 %v703, %v719
    %v722 = vmul.f32 %v621, 0.35355338
    %v723 = vmul.f32 %v624, 0.35355338
    %725 = vrot.lane.b32.xlu0 %v722, 96
    %v726 = vpop.permute.xlu0 %725
    %728 = vxpose.xlu0.b32.start [1/16] %v726, 128
    %729 = vxpose.xlu0.b32.cont [2/16] 0.0, 128
    %730 = vxpose.xlu0.b32.cont [3/16] 0.0, 128
    %731 = vxpose.xlu0.b32.cont [4/16] 0.0, 128
    %732 = vxpose.xlu0.b32.cont [5/16] 0.0, 128
    %733 = vxpose.xlu0.b32.cont [6/16] 0.0, 128
    %734 = vxpose.xlu0.b32.cont [7/16] 0.0, 128
    %735 = vxpose.xlu0.b32.cont [8/16] 0.0, 128
    %736 = vxpose.xlu0.b32.cont [9/16] 0.0, 128
    %737 = vxpose.xlu0.b32.cont [10/16] 0.0, 128
    %738 = vxpose.xlu0.b32.cont [11/16] 0.0, 128
    %739 = vxpose.xlu0.b32.cont [12/16] 0.0, 128
    %740 = vxpose.xlu0.b32.cont [13/16] 0.0, 128
    %741 = vxpose.xlu0.b32.cont [14/16] 0.0, 128
    %742 = vxpose.xlu0.b32.cont [15/16] 0.0, 128
    %743 = vxpose.xlu0.b32.end [16/16] 0.0, 128
    %v744 = vpop.trf.xlu0
    %v745 = vpop.trf.xlu0
    %v746 = vpop.trf.xlu0
    %v747 = vpop.trf.xlu0
    %v748 = vpop.trf.xlu0
    %v749 = vpop.trf.xlu0
    %v750 = vpop.trf.xlu0
    %v751 = vpop.trf.xlu0
    %v752 = vpop.trf.xlu0
    %v753 = vpop.trf.xlu0
    %v754 = vpop.trf.xlu0
    %v755 = vpop.trf.xlu0
    %v756 = vpop.trf.xlu0
    %v757 = vpop.trf.xlu0
    %v758 = vpop.trf.xlu0
    %v759 = vpop.trf.xlu0
    %v761 = vsel %vm200, %v744, 0
    %v764 = vsel %vm200, %v745, 0
    %v767 = vsel %vm200, %v746, 0
    %v770 = vsel %vm200, %v747, 0
    %772 = vmatpush.msra.mxu0 0.0
    %773 = vmatpush.msra.mxu0 0.0
    %774 = vmatpush.msra.mxu0 0.0
    %775 = vmatpush.msra.mxu0 0.0
    %776 = vmatpush.msra.mxu0 0.0
    %777 = vmatpush.msra.mxu0 0.0
    %778 = vmatpush.msra.mxu0 0.0
    %779 = vmatpush.msra.mxu0 0.0
    %780 = vmatpush.msra.mxu0 0.0
    %781 = vmatpush.msra.mxu0 0.0
    %782 = vmatpush.msra.mxu0 0.0
    %783 = vmatpush.msra.mxu0 0.0
    %784 = vmatpush.msra.mxu0 0.0
    %785 = vmatpush.msra.mxu0 0.0
    %786 = vmatpush.msra.mxu0 0.0
    %787 = vmatpush.msra.mxu0 %v621
    %788 = vmatmul.f32.gmra.mxu0 %v761
    %v789 = vpop.f32.mrf.mxu0
    %v790 = vadd.f32 0.0, %v789
    %791 = vmatmul.f32.gmra.mxu0 %v764
    %v792 = vpop.f32.mrf.mxu0
    %v793 = vadd.f32 0.0, %v792
    %794 = vmatmul.f32.gmra.mxu0 %v767
    %v795 = vpop.f32.mrf.mxu0
    %v796 = vadd.f32 0.0, %v795
    %797 = vmatmul.f32.gmra.mxu0 %v770
    %v798 = vpop.f32.mrf.mxu0
    %v799 = vadd.f32 0.0, %v798
    %800 = vdwg.mxu0
    %802 = vrot.lane.b32.xlu0 %v723, 96
    %v803 = vpop.permute.xlu0 %802
    %805 = vxpose.xlu0.b32.start [1/16] %v803, 128
    %806 = vxpose.xlu0.b32.cont [2/16] 0.0, 128
    %807 = vxpose.xlu0.b32.cont [3/16] 0.0, 128
    %808 = vxpose.xlu0.b32.cont [4/16] 0.0, 128
    %809 = vxpose.xlu0.b32.cont [5/16] 0.0, 128
    %810 = vxpose.xlu0.b32.cont [6/16] 0.0, 128
    %811 = vxpose.xlu0.b32.cont [7/16] 0.0, 128
    %812 = vxpose.xlu0.b32.cont [8/16] 0.0, 128
    %813 = vxpose.xlu0.b32.cont [9/16] 0.0, 128
    %814 = vxpose.xlu0.b32.cont [10/16] 0.0, 128
    %815 = vxpose.xlu0.b32.cont [11/16] 0.0, 128
    %816 = vxpose.xlu0.b32.cont [12/16] 0.0, 128
    %817 = vxpose.xlu0.b32.cont [13/16] 0.0, 128
    %818 = vxpose.xlu0.b32.cont [14/16] 0.0, 128
    %819 = vxpose.xlu0.b32.cont [15/16] 0.0, 128
    %820 = vxpose.xlu0.b32.end [16/16] 0.0, 128
    %v821 = vpop.trf.xlu0
    %v822 = vpop.trf.xlu0
    %v823 = vpop.trf.xlu0
    %v824 = vpop.trf.xlu0
    %v825 = vpop.trf.xlu0
    %v826 = vpop.trf.xlu0
    %v827 = vpop.trf.xlu0
    %v828 = vpop.trf.xlu0
    %v829 = vpop.trf.xlu0
    %v830 = vpop.trf.xlu0
    %v831 = vpop.trf.xlu0
    %v832 = vpop.trf.xlu0
    %v833 = vpop.trf.xlu0
    %v834 = vpop.trf.xlu0
    %v835 = vpop.trf.xlu0
    %v836 = vpop.trf.xlu0
    %v838 = vsel %vm200, %v821, 0
    %v841 = vsel %vm200, %v822, 0
    %v844 = vsel %vm200, %v823, 0
    %v847 = vsel %vm200, %v824, 0
    %849 = vmatpush.msra.mxu0 0.0
    %850 = vmatpush.msra.mxu0 0.0
    %851 = vmatpush.msra.mxu0 0.0
    %852 = vmatpush.msra.mxu0 0.0
    %853 = vmatpush.msra.mxu0 0.0
    %854 = vmatpush.msra.mxu0 0.0
    %855 = vmatpush.msra.mxu0 0.0
    %856 = vmatpush.msra.mxu0 0.0
    %857 = vmatpush.msra.mxu0 0.0
    %858 = vmatpush.msra.mxu0 0.0
    %859 = vmatpush.msra.mxu0 0.0
    %860 = vmatpush.msra.mxu0 0.0
    %861 = vmatpush.msra.mxu0 0.0
    %862 = vmatpush.msra.mxu0 0.0
    %863 = vmatpush.msra.mxu0 0.0
    %864 = vmatpush.msra.mxu0 %v624
    %865 = vmatmul.f32.gmra.mxu0 %v838
    %v866 = vpop.f32.mrf.mxu0
    %v867 = vadd.f32 0.0, %v866
    %868 = vmatmul.f32.gmra.mxu0 %v841
    %v869 = vpop.f32.mrf.mxu0
    %v870 = vadd.f32 0.0, %v869
    %871 = vmatmul.f32.gmra.mxu0 %v844
    %v872 = vpop.f32.mrf.mxu0
    %v873 = vadd.f32 0.0, %v872
    %874 = vmatmul.f32.gmra.mxu0 %v847
    %v875 = vpop.f32.mrf.mxu0
    %v876 = vadd.f32 0.0, %v875
    %877 = vdwg.mxu0
    %v878 = vsel %vm71, %v790, -inf
    %v879 = vsel %vm71, %v867, -inf
    %v880 = vmax.f32 %v878, %v879
    %v881 = vsel %vm71, %v793, -inf
    %v882 = vsel %vm71, %v870, -inf
    %v883 = vmax.f32 %v881, %v882
    %v884 = vsel %vm71, %v796, -inf
    %v885 = vsel %vm71, %v873, -inf
    %v886 = vmax.f32 %v884, %v885
    %v887 = vsel %vm71, %v799, -inf
    %v888 = vsel %vm71, %v876, -inf
    %v889 = vmax.f32 %v887, %v888
    %v890 = vsub.f32 %v790, %v880
    %v891 = vsub.f32 %v793, %v883
    %v892 = vsub.f32 %v796, %v886
    %v893 = vsub.f32 %v799, %v889
    %v894 = vsub.f32 %v867, %v880
    %v895 = vsub.f32 %v870, %v883
    %v896 = vsub.f32 %v873, %v886
    %v897 = vsub.f32 %v876, %v889
    %v898 = vmul.f32 %v890, 1.442695
    %v899 = vpow.pop %v898
    %v900 = vmul.f32 %v891, 1.442695
    %v901 = vpow.pop %v900
    %v902 = vmul.f32 %v892, 1.442695
    %v903 = vpow.pop %v902
    %v904 = vmul.f32 %v893, 1.442695
    %v905 = vpow.pop %v904
    %v906 = vmul.f32 %v894, 1.442695
    %v907 = vpow.pop %v906
    %v908 = vmul.f32 %v895, 1.442695
    %v909 = vpow.pop %v908
    %v910 = vmul.f32 %v896, 1.442695
    %v911 = vpow.pop %v910
    %v912 = vmul.f32 %v897, 1.442695
    %v913 = vpow.pop %v912
    %v914 = vsel %vm71, %v899, 0.0
    %v915 = vsel %vm71, %v907, 0.0
    %v916 = vadd.f32 %v914, %v915
    %v917 = vsel %vm71, %v901, 0.0
    %v918 = vsel %vm71, %v909, 0.0
    %v919 = vadd.f32 %v917, %v918
    %v920 = vsel %vm71, %v903, 0.0
    %v921 = vsel %vm71, %v911, 0.0
    %v922 = vadd.f32 %v920, %v921
    %v923 = vsel %vm71, %v905, 0.0
    %v924 = vsel %vm71, %v913, 0.0
    %v925 = vadd.f32 %v923, %v924
    %v926 = vrcp.pop %v916
    %v927 = vrcp.pop %v919
    %v928 = vrcp.pop %v922
    %v929 = vrcp.pop %v925
    %v930 = vmul.f32 %v899, %v926
    %v931 = vmul.f32 %v901, %v927
    %v932 = vmul.f32 %v903, %v928
    %v933 = vmul.f32 %v905, %v929
    %v934 = vmul.f32 %v907, %v926
    %v935 = vmul.f32 %v909, %v927
    %v936 = vmul.f32 %v911, %v928
    %v937 = vmul.f32 %v913, %v929
    %938 = vrot.lane.b32.xlu0 %v621, 64
    %v939 = vpop.permute.xlu0 %938
    %v942 = vsel %vm200, %v720, 0
    %944 = vmatpush.msra.mxu0 0.0
    %945 = vmatpush.msra.mxu0 0.0
    %946 = vmatpush.msra.mxu0 0.0
    %947 = vmatpush.msra.mxu0 0.0
    %948 = vmatpush.msra.mxu0 0.0
    %949 = vmatpush.msra.mxu0 0.0
    %950 = vmatpush.msra.mxu0 0.0
    %951 = vmatpush.msra.mxu0 0.0
    %952 = vmatpush.msra.mxu0 0.0
    %953 = vmatpush.msra.mxu0 0.0
    %954 = vmatpush.msra.mxu0 0.0
    %955 = vmatpush.msra.mxu0 0.0
    %956 = vmatpush.msra.mxu0 0.0
    %957 = vmatpush.msra.mxu0 0.0
    %958 = vmatpush.msra.mxu0 0.0
    %959 = vmatpush.msra.mxu0 %v939
    %960 = vmatmul.f32.gmra.mxu0 %v942
    %v961 = vpop.f32.mrf.mxu0
    %v962 = vadd.f32 0.0, %v961
    %963 = vdwg.mxu0
    %964 = vrot.lane.b32.xlu0 %v624, 64
    %v965 = vpop.permute.xlu0 %964
    %v968 = vsel %vm200, %v721, 0
    %970 = vmatpush.msra.mxu0 0.0
    %971 = vmatpush.msra.mxu0 0.0
    %972 = vmatpush.msra.mxu0 0.0
    %973 = vmatpush.msra.mxu0 0.0
    %974 = vmatpush.msra.mxu0 0.0
    %975 = vmatpush.msra.mxu0 0.0
    %976 = vmatpush.msra.mxu0 0.0
    %977 = vmatpush.msra.mxu0 0.0
    %978 = vmatpush.msra.mxu0 0.0
    %979 = vmatpush.msra.mxu0 0.0
    %980 = vmatpush.msra.mxu0 0.0
    %981 = vmatpush.msra.mxu0 0.0
    %982 = vmatpush.msra.mxu0 0.0
    %983 = vmatpush.msra.mxu0 0.0
    %984 = vmatpush.msra.mxu0 0.0
    %985 = vmatpush.msra.mxu0 %v965
    %986 = vmatmul.f32.gmra.mxu0 %v968
    %v987 = vpop.f32.mrf.mxu0
    %v988 = vadd.f32 0.0, %v987
    %989 = vdwg.mxu0
    %v991 = vsel %vm71, %v962, 0
    %993 = vmatpush.msra.mxu0 0.0
    %994 = vmatpush.msra.mxu0 0.0
    %995 = vmatpush.msra.mxu0 0.0
    %996 = vmatpush.msra.mxu0 0.0
    %997 = vmatpush.msra.mxu0 0.0
    %998 = vmatpush.msra.mxu0 0.0
    %999 = vmatpush.msra.mxu0 0.0
    %1000 = vmatpush.msra.mxu0 0.0
    %1001 = vmatpush.msra.mxu0 0.0
    %1002 = vmatpush.msra.mxu0 0.0
    %1003 = vmatpush.msra.mxu0 0.0
    %1004 = vmatpush.msra.mxu0 0.0
    %1005 = vmatpush.msra.mxu0 %v933
    %1006 = vmatpush.msra.mxu0 %v932
    %1007 = vmatpush.msra.mxu0 %v931
    %1008 = vmatpush.msra.mxu0 %v930
    %1009 = vmatmul.f32.gmra.mxu0 %v991
    %v1010 = vpop.f32.mrf.mxu0
    %v1011 = vadd.f32 0.0, %v1010
    %1012 = vdwg.mxu0
    %v1014 = vsel %vm71, %v988, 0
    %1016 = vmatpush.msra.mxu0 0.0
    %1017 = vmatpush.msra.mxu0 0.0
    %1018 = vmatpush.msra.mxu0 0.0
    %1019 = vmatpush.msra.mxu0 0.0
    %1020 = vmatpush.msra.mxu0 0.0
    %1021 = vmatpush.msra.mxu0 0.0
    %1022 = vmatpush.msra.mxu0 0.0
    %1023 = vmatpush.msra.mxu0 0.0
    %1024 = vmatpush.msra.mxu0 0.0
    %1025 = vmatpush.msra.mxu0 0.0
    %1026 = vmatpush.msra.mxu0 0.0
    %1027 = vmatpush.msra.mxu0 0.0
    %1028 = vmatpush.msra.mxu0 %v937
    %1029 = vmatpush.msra.mxu0 %v936
    %1030 = vmatpush.msra.mxu0 %v935
    %1031 = vmatpush.msra.mxu0 %v934
    %1032 = vmatmul.f32.gmra.mxu0 %v1014
    %v1033 = vpop.f32.mrf.mxu0
    %v1034 = vadd.f32 0.0, %v1033
    %1035 = vdwg.mxu0
    %1036 = vst.msk [vmem:[#allocation8 + $0x8] sm:$0xff] %vm71, %v1011
    %1037 = vst.msk [vmem:[#allocation8 + $0x18] sm:$0xff] %vm71, %v1034
    %s1038 = scalar_lea.vmem [#allocation5], 32
    %v1039 = vld [vmem:[%s1038] sm:$0xff]
    %v1040 = vld [vmem:[%s1038 + $0x8] sm:$0xff]
    %v1041 = vld [vmem:[%s1038 + $0x10] sm:$0xff]
    %v1042 = vld [vmem:[%s1038 + $0x18] sm:$0xff]
    %s1043 = scalar_lea.vmem [#allocation7], 1
    %v1044 = vld [vmem:[%s1043] sm:$0x1]
    %v1045 = vld [vmem:[#allocation2] sm:$0xff]
    %v1046 = vld [vmem:[#allocation2 + $0x8] sm:$0xff]
    %v1047 = vld [vmem:[#allocation2 + $0x10] sm:$0xff]
    %v1048 = vld [vmem:[#allocation2 + $0x18] sm:$0xff]
    %v1049 = vmul.f32 %v1045, %v1045
    %v1050 = vmul.f32 %v1046, %v1046
    %v1051 = vmul.f32 %v1047, %v1047
    %v1052 = vmul.f32 %v1048, %v1048
    %v1053 = vsel %vm71, %v1049, 0.0
    %v1054 = vsel %vm71, %v1050, 0.0
    %v1055 = vadd.f32 %v1053, %v1054
    %v1056 = vrot.slane %v1055, 4
    %v1057 = vadd.f32 %v1055, %v1056
    %v1058 = vrot.slane %v1057, 2
    %v1059 = vadd.f32 %v1057, %v1058
    %v1060 = vrot.slane %v1059, 1
    %v1061 = vadd.f32 %v1059, %v1060
    %v1062 = vsel %vm71, %v1051, 0.0
    %v1063 = vsel %vm71, %v1052, 0.0
    %v1064 = vadd.f32 %v1062, %v1063
    %v1065 = vrot.slane %v1064, 4
    %v1066 = vadd.f32 %v1064, %v1065
    %v1067 = vrot.slane %v1066, 2
    %v1068 = vadd.f32 %v1066, %v1067
    %v1069 = vrot.slane %v1068, 1
    %v1070 = vadd.f32 %v1068, %v1069
    %v1071 = vmax.f32 %v1061, 1e-24
    %v1072 = vmax.f32 %v1070, 1e-24
    %v1073 = vrsqrt.pop %v1071
    %v1074 = vmul.f32 %v1073, %v1071
    %v1075 = vmul.f32 %v1074, %v1073
    %v1076 = vmul.f32 0.5, %v1075
    %v1077 = vsub.f32 1.5, %v1076
    %v1078 = vmul.f32 %v1073, %v1077
    %vm1079 = vweird.f32 %v1071
    %vm1080 = vweird.f32 %v1073
    %vm1081 = vmor %vm1079, %vm1080
    %v1082 = vsel %vm1081, %v1073, %v1078
    %v1083 = vrsqrt.pop %v1072
    %v1084 = vmul.f32 %v1083, %v1072
    %v1085 = vmul.f32 %v1084, %v1083
    %v1086 = vmul.f32 0.5, %v1085
    %v1087 = vsub.f32 1.5, %v1086
    %v1088 = vmul.f32 %v1083, %v1087
    %vm1089 = vweird.f32 %v1072
    %vm1090 = vweird.f32 %v1083
    %vm1091 = vmor %vm1089, %vm1090
    %v1092 = vsel %vm1091, %v1083, %v1088
    %v1093 = vmul.f32 %v1045, %v1082
    %v1094 = vmul.f32 %v1046, %v1082
    %v1095 = vmul.f32 %v1047, %v1092
    %v1096 = vmul.f32 %v1048, %v1092
    %v1098 = vperm.slane %v1044, 0
    %v1101 = vsel %vm71, %v1093, 0
    %v1104 = vsel %vm71, %v1094, 0
    %v1107 = vsel %vm71, %v1095, 0
    %v1110 = vsel %vm71, %v1096, 0
    %1112 = vmatpush.msra.mxu0 0.0
    %1113 = vmatpush.msra.mxu0 0.0
    %1114 = vmatpush.msra.mxu0 0.0
    %1115 = vmatpush.msra.mxu0 0.0
    %1116 = vmatpush.msra.mxu0 0.0
    %1117 = vmatpush.msra.mxu0 0.0
    %1118 = vmatpush.msra.mxu0 0.0
    %1119 = vmatpush.msra.mxu0 0.0
    %1120 = vmatpush.msra.mxu0 0.0
    %1121 = vmatpush.msra.mxu0 0.0
    %1122 = vmatpush.msra.mxu0 0.0
    %1123 = vmatpush.msra.mxu0 0.0
    %1124 = vmatpush.msra.mxu0 %v1042
    %1125 = vmatpush.msra.mxu0 %v1041
    %1126 = vmatpush.msra.mxu0 %v1040
    %1127 = vmatpush.msra.mxu0 %v1039
    %1128 = vmatmul.f32.gmra.mxu0 %v1101
    %v1129 = vpop.f32.mrf.mxu0
    %v1130 = vadd.f32 %v1098, %v1129
    %1131 = vmatmul.f32.gmra.mxu0 %v1104
    %v1132 = vpop.f32.mrf.mxu0
    %v1133 = vadd.f32 %v1098, %v1132
    %1134 = vmatmul.f32.gmra.mxu0 %v1107
    %v1135 = vpop.f32.mrf.mxu0
    %v1136 = vadd.f32 %v1098, %v1135
    %1137 = vmatmul.f32.gmra.mxu0 %v1110
    %v1138 = vpop.f32.mrf.mxu0
    %v1139 = vadd.f32 %v1098, %v1138
    %1140 = vdwg.mxu0
    %v1141 = vmul.f32 %v1130, 0.17677669
    %v1142 = vmul.f32 %v1133, 0.17677669
    %v1143 = vmul.f32 %v1136, 0.17677669
    %v1144 = vmul.f32 %v1139, 0.17677669
    %1147 = vrot.lane.b32.xlu0 %v1130, 96
    %v1148 = vpop.permute.xlu0 %1147
    %1149 = vrot.lane.b32.xlu0 %v1133, 96
    %v1150 = vpop.permute.xlu0 %1149
    %v1152 = vsel %vm71, %v1141, 0
    %v1155 = vsel %vm71, %v1142, 0
    %v1157 = vsel %vm71, %v1148, 0
    %v1159 = vsel %vm71, %v1150, 0
    %1161 = vmatpush.xpose.msra.mxu0 0.0
    %1162 = vmatpush.xpose.msra.mxu0 0.0
    %1163 = vmatpush.xpose.msra.mxu0 0.0
    %1164 = vmatpush.xpose.msra.mxu0 0.0
    %1165 = vmatpush.xpose.msra.mxu0 0.0
    %1166 = vmatpush.xpose.msra.mxu0 0.0
    %1167 = vmatpush.xpose.msra.mxu0 0.0
    %1168 = vmatpush.xpose.msra.mxu0 0.0
    %1169 = vmatpush.xpose.msra.mxu0 0.0
    %1170 = vmatpush.xpose.msra.mxu0 0.0
    %1171 = vmatpush.xpose.msra.mxu0 0.0
    %1172 = vmatpush.xpose.msra.mxu0 0.0
    %1173 = vmatpush.xpose.msra.mxu0 0.0
    %1174 = vmatpush.xpose.msra.mxu0 0.0
    %1175 = vmatpush.xpose.msra.mxu0 %v1159
    %1176 = vmatpush.xpose.msra.mxu0 %v1157
    %1177 = vmatmul.f32.gmra.mxu0 %v1152
    %v1178 = vpop.f32.mrf.mxu0
    %v1179 = vadd.f32 0.0, %v1178
    %1180 = vmatmul.f32.gmra.mxu0 %v1155
    %v1181 = vpop.f32.mrf.mxu0
    %v1182 = vadd.f32 0.0, %v1181
    %1183 = vdwg.mxu0
    %1186 = vrot.lane.b32.xlu0 %v1136, 96
    %v1187 = vpop.permute.xlu0 %1186
    %1188 = vrot.lane.b32.xlu0 %v1139, 96
    %v1189 = vpop.permute.xlu0 %1188
    %v1191 = vsel %vm71, %v1143, 0
    %v1194 = vsel %vm71, %v1144, 0
    %v1196 = vsel %vm71, %v1187, 0
    %v1198 = vsel %vm71, %v1189, 0
    %1200 = vmatpush.xpose.msra.mxu0 0.0
    %1201 = vmatpush.xpose.msra.mxu0 0.0
    %1202 = vmatpush.xpose.msra.mxu0 0.0
    %1203 = vmatpush.xpose.msra.mxu0 0.0
    %1204 = vmatpush.xpose.msra.mxu0 0.0
    %1205 = vmatpush.xpose.msra.mxu0 0.0
    %1206 = vmatpush.xpose.msra.mxu0 0.0
    %1207 = vmatpush.xpose.msra.mxu0 0.0
    %1208 = vmatpush.xpose.msra.mxu0 0.0
    %1209 = vmatpush.xpose.msra.mxu0 0.0
    %1210 = vmatpush.xpose.msra.mxu0 0.0
    %1211 = vmatpush.xpose.msra.mxu0 0.0
    %1212 = vmatpush.xpose.msra.mxu0 0.0
    %1213 = vmatpush.xpose.msra.mxu0 0.0
    %1214 = vmatpush.xpose.msra.mxu0 %v1198
    %1215 = vmatpush.xpose.msra.mxu0 %v1196
    %1216 = vmatmul.f32.gmra.mxu0 %v1191
    %v1217 = vpop.f32.mrf.mxu0
    %v1218 = vadd.f32 0.0, %v1217
    %1219 = vmatmul.f32.gmra.mxu0 %v1194
    %v1220 = vpop.f32.mrf.mxu0
    %v1221 = vadd.f32 0.0, %v1220
    %1222 = vdwg.mxu0
    %vm1223 = vcmask 130048
    %v1224 = vsel %vm1223, %v1179, -inf
    %v1225 = vsel %vm1223, %v1182, -inf
    %v1226 = vmax.f32 %v1224, %v1225
    %v1227 = vrot.slane %v1226, 4
    %v1228 = vmax.f32 %v1226, %v1227
    %v1229 = vrot.slane %v1228, 2
    %v1230 = vmax.f32 %v1228, %v1229
    %v1231 = vrot.slane %v1230, 1
    %v1232 = vmax.f32 %v1230, %v1231
    %v1233 = vsel %vm1223, %v1218, -inf
    %v1234 = vsel %vm1223, %v1221, -inf
    %v1235 = vmax.f32 %v1233, %v1234
    %v1236 = vrot.slane %v1235, 4
    %v1237 = vmax.f32 %v1235, %v1236
    %v1238 = vrot.slane %v1237, 2
    %v1239 = vmax.f32 %v1237, %v1238
    %v1240 = vrot.slane %v1239, 1
    %v1241 = vmax.f32 %v1239, %v1240
    %v1242 = vsub.f32 %v1179, %v1232
    %v1243 = vsub.f32 %v1182, %v1232
    %v1244 = vsub.f32 %v1218, %v1241
    %v1245 = vsub.f32 %v1221, %v1241
    %v1246 = vmul.f32 %v1242, 1.442695
    %v1247 = vpow.pop %v1246
    %v1248 = vmul.f32 %v1243, 1.442695
    %v1249 = vpow.pop %v1248
    %v1250 = vmul.f32 %v1244, 1.442695
    %v1251 = vpow.pop %v1250
    %v1252 = vmul.f32 %v1245, 1.442695
    %v1253 = vpow.pop %v1252
    %v1254 = vsel %vm1223, %v1247, 0.0
    %v1255 = vsel %vm1223, %v1249, 0.0
    %v1256 = vadd.f32 %v1254, %v1255
    %v1257 = vrot.slane %v1256, 4
    %v1258 = vadd.f32 %v1256, %v1257
    %v1259 = vrot.slane %v1258, 2
    %v1260 = vadd.f32 %v1258, %v1259
    %v1261 = vrot.slane %v1260, 1
    %v1262 = vadd.f32 %v1260, %v1261
    %v1263 = vsel %vm1223, %v1251, 0.0
    %v1264 = vsel %vm1223, %v1253, 0.0
    %v1265 = vadd.f32 %v1263, %v1264
    %v1266 = vrot.slane %v1265, 4
    %v1267 = vadd.f32 %v1265, %v1266
    %v1268 = vrot.slane %v1267, 2
    %v1269 = vadd.f32 %v1267, %v1268
    %v1270 = vrot.slane %v1269, 1
    %v1271 = vadd.f32 %v1269, %v1270
    %v1272 = vrcp.pop %v1262
    %v1273 = vrcp.pop %v1271
    %v1274 = vmul.f32 %v1247, %v1272
    %v1275 = vmul.f32 %v1249, %v1272
    %v1276 = vmul.f32 %v1251, %v1273
    %v1277 = vmul.f32 %v1253, %v1273
    %v1278 = vmul.f32 %v1130, 0.25
    %v1279 = vmul.f32 %v1133, 0.25
    %v1280 = vmul.f32 %v1136, 0.25
    %v1281 = vmul.f32 %v1139, 0.25
    %1284 = vrot.lane.b32.xlu0 %v1278, 96
    %v1285 = vpop.permute.xlu0 %1284
    %1286 = vrot.lane.b32.xlu0 %v1279, 96
    %v1287 = vpop.permute.xlu0 %1286
    %1290 = vxpose.xlu0.b32.start [1/16] %v1285, 128
    %1291 = vxpose.xlu0.b32.cont [2/16] %v1287, 128
    %1292 = vxpose.xlu0.b32.cont [3/16] 0.0, 128
    %1293 = vxpose.xlu0.b32.cont [4/16] 0.0, 128
    %1294 = vxpose.xlu0.b32.cont [5/16] 0.0, 128
    %1295 = vxpose.xlu0.b32.cont [6/16] 0.0, 128
    %1296 = vxpose.xlu0.b32.cont [7/16] 0.0, 128
    %1297 = vxpose.xlu0.b32.cont [8/16] 0.0, 128
    %1298 = vxpose.xlu0.b32.cont [9/16] 0.0, 128
    %1299 = vxpose.xlu0.b32.cont [10/16] 0.0, 128
    %1300 = vxpose.xlu0.b32.cont [11/16] 0.0, 128
    %1301 = vxpose.xlu0.b32.cont [12/16] 0.0, 128
    %1302 = vxpose.xlu0.b32.cont [13/16] 0.0, 128
    %1303 = vxpose.xlu0.b32.cont [14/16] 0.0, 128
    %1304 = vxpose.xlu0.b32.cont [15/16] 0.0, 128
    %1305 = vxpose.xlu0.b32.end [16/16] 0.0, 128
    %v1306 = vpop.trf.xlu0
    %v1307 = vpop.trf.xlu0
    %v1308 = vpop.trf.xlu0
    %v1309 = vpop.trf.xlu0
    %v1310 = vpop.trf.xlu0
    %v1311 = vpop.trf.xlu0
    %v1312 = vpop.trf.xlu0
    %v1313 = vpop.trf.xlu0
    %v1314 = vpop.trf.xlu0
    %v1315 = vpop.trf.xlu0
    %v1316 = vpop.trf.xlu0
    %v1317 = vpop.trf.xlu0
    %v1318 = vpop.trf.xlu0
    %v1319 = vpop.trf.xlu0
    %v1320 = vpop.trf.xlu0
    %v1321 = vpop.trf.xlu0
    %v1323 = vsel %vm1223, %v1306, 0
    %v1326 = vsel %vm1223, %v1307, 0
    %v1329 = vsel %vm1223, %v1308, 0
    %v1332 = vsel %vm1223, %v1309, 0
    %1334 = vmatpush.msra.mxu0 0.0
    %1335 = vmatpush.msra.mxu0 0.0
    %1336 = vmatpush.msra.mxu0 0.0
    %1337 = vmatpush.msra.mxu0 0.0
    %1338 = vmatpush.msra.mxu0 0.0
    %1339 = vmatpush.msra.mxu0 0.0
    %1340 = vmatpush.msra.mxu0 0.0
    %1341 = vmatpush.msra.mxu0 0.0
    %1342 = vmatpush.msra.mxu0 0.0
    %1343 = vmatpush.msra.mxu0 0.0
    %1344 = vmatpush.msra.mxu0 0.0
    %1345 = vmatpush.msra.mxu0 0.0
    %1346 = vmatpush.msra.mxu0 0.0
    %1347 = vmatpush.msra.mxu0 0.0
    %1348 = vmatpush.msra.mxu0 %v1133
    %1349 = vmatpush.msra.mxu0 %v1130
    %1350 = vmatmul.f32.gmra.mxu0 %v1323
    %v1351 = vpop.f32.mrf.mxu0
    %v1352 = vadd.f32 0.0, %v1351
    %1353 = vmatmul.f32.gmra.mxu0 %v1326
    %v1354 = vpop.f32.mrf.mxu0
    %v1355 = vadd.f32 0.0, %v1354
    %1356 = vmatmul.f32.gmra.mxu0 %v1329
    %v1357 = vpop.f32.mrf.mxu0
    %v1358 = vadd.f32 0.0, %v1357
    %1359 = vmatmul.f32.gmra.mxu0 %v1332
    %v1360 = vpop.f32.mrf.mxu0
    %v1361 = vadd.f32 0.0, %v1360
    %1362 = vdwg.mxu0
    %1365 = vrot.lane.b32.xlu0 %v1280, 96
    %v1366 = vpop.permute.xlu0 %1365
    %1367 = vrot.lane.b32.xlu0 %v1281, 96
    %v1368 = vpop.permute.xlu0 %1367
    %1371 = vxpose.xlu0.b32.start [1/16] %v1366, 128
    %1372 = vxpose.xlu0.b32.cont [2/16] %v1368, 128
    %1373 = vxpose.xlu0.b32.cont [3/16] 0.0, 128
    %1374 = vxpose.xlu0.b32.cont [4/16] 0.0, 128
    %1375 = vxpose.xlu0.b32.cont [5/16] 0.0, 128
    %1376 = vxpose.xlu0.b32.cont [6/16] 0.0, 128
    %1377 = vxpose.xlu0.b32.cont [7/16] 0.0, 128
    %1378 = vxpose.xlu0.b32.cont [8/16] 0.0, 128
    %1379 = vxpose.xlu0.b32.cont [9/16] 0.0, 128
    %1380 = vxpose.xlu0.b32.cont [10/16] 0.0, 128
    %1381 = vxpose.xlu0.b32.cont [11/16] 0.0, 128
    %1382 = vxpose.xlu0.b32.cont [12/16] 0.0, 128
    %1383 = vxpose.xlu0.b32.cont [13/16] 0.0, 128
    %1384 = vxpose.xlu0.b32.cont [14/16] 0.0, 128
    %1385 = vxpose.xlu0.b32.cont [15/16] 0.0, 128
    %1386 = vxpose.xlu0.b32.end [16/16] 0.0, 128
    %v1387 = vpop.trf.xlu0
    %v1388 = vpop.trf.xlu0
    %v1389 = vpop.trf.xlu0
    %v1390 = vpop.trf.xlu0
    %v1391 = vpop.trf.xlu0
    %v1392 = vpop.trf.xlu0
    %v1393 = vpop.trf.xlu0
    %v1394 = vpop.trf.xlu0
    %v1395 = vpop.trf.xlu0
    %v1396 = vpop.trf.xlu0
    %v1397 = vpop.trf.xlu0
    %v1398 = vpop.trf.xlu0
    %v1399 = vpop.trf.xlu0
    %v1400 = vpop.trf.xlu0
    %v1401 = vpop.trf.xlu0
    %v1402 = vpop.trf.xlu0
    %v1404 = vsel %vm1223, %v1387, 0
    %v1407 = vsel %vm1223, %v1388, 0
    %v1410 = vsel %vm1223, %v1389, 0
    %v1413 = vsel %vm1223, %v1390, 0
    %1415 = vmatpush.msra.mxu0 0.0
    %1416 = vmatpush.msra.mxu0 0.0
    %1417 = vmatpush.msra.mxu0 0.0
    %1418 = vmatpush.msra.mxu0 0.0
    %1419 = vmatpush.msra.mxu0 0.0
    %1420 = vmatpush.msra.mxu0 0.0
    %1421 = vmatpush.msra.mxu0 0.0
    %1422 = vmatpush.msra.mxu0 0.0
    %1423 = vmatpush.msra.mxu0 0.0
    %1424 = vmatpush.msra.mxu0 0.0
    %1425 = vmatpush.msra.mxu0 0.0
    %1426 = vmatpush.msra.mxu0 0.0
    %1427 = vmatpush.msra.mxu0 0.0
    %1428 = vmatpush.msra.mxu0 0.0
    %1429 = vmatpush.msra.mxu0 %v1139
    %1430 = vmatpush.msra.mxu0 %v1136
    %1431 = vmatmul.f32.gmra.mxu0 %v1404
    %v1432 = vpop.f32.mrf.mxu0
    %v1433 = vadd.f32 0.0, %v1432
    %1434 = vmatmul.f32.gmra.mxu0 %v1407
    %v1435 = vpop.f32.mrf.mxu0
    %v1436 = vadd.f32 0.0, %v1435
    %1437 = vmatmul.f32.gmra.mxu0 %v1410
    %v1438 = vpop.f32.mrf.mxu0
    %v1439 = vadd.f32 0.0, %v1438
    %1440 = vmatmul.f32.gmra.mxu0 %v1413
    %v1441 = vpop.f32.mrf.mxu0
    %v1442 = vadd.f32 0.0, %v1441
    %1443 = vdwg.mxu0
    %v1444 = vsel %vm71, %v1352, -inf
    %v1445 = vsel %vm71, %v1433, -inf
    %v1446 = vmax.f32 %v1444, %v1445
    %v1447 = vsel %vm71, %v1355, -inf
    %v1448 = vsel %vm71, %v1436, -inf
    %v1449 = vmax.f32 %v1447, %v1448
    %v1450 = vsel %vm71, %v1358, -inf
    %v1451 = vsel %vm71, %v1439, -inf
    %v1452 = vmax.f32 %v1450, %v1451
    %v1453 = vsel %vm71, %v1361, -inf
    %v1454 = vsel %vm71, %v1442, -inf
    %v1455 = vmax.f32 %v1453, %v1454
    %v1456 = vsub.f32 %v1352, %v1446
    %v1457 = vsub.f32 %v1355, %v1449
    %v1458 = vsub.f32 %v1358, %v1452
    %v1459 = vsub.f32 %v1361, %v1455
    %v1460 = vsub.f32 %v1433, %v1446
    %v1461 = vsub.f32 %v1436, %v1449
    %v1462 = vsub.f32 %v1439, %v1452
    %v1463 = vsub.f32 %v1442, %v1455
    %v1464 = vmul.f32 %v1456, 1.442695
    %v1465 = vpow.pop %v1464
    %v1466 = vmul.f32 %v1457, 1.442695
    %v1467 = vpow.pop %v1466
    %v1468 = vmul.f32 %v1458, 1.442695
    %v1469 = vpow.pop %v1468
    %v1470 = vmul.f32 %v1459, 1.442695
    %v1471 = vpow.pop %v1470
    %v1472 = vmul.f32 %v1460, 1.442695
    %v1473 = vpow.pop %v1472
    %v1474 = vmul.f32 %v1461, 1.442695
    %v1475 = vpow.pop %v1474
    %v1476 = vmul.f32 %v1462, 1.442695
    %v1477 = vpow.pop %v1476
    %v1478 = vmul.f32 %v1463, 1.442695
    %v1479 = vpow.pop %v1478
    %v1480 = vsel %vm71, %v1465, 0.0
    %v1481 = vsel %vm71, %v1473, 0.0
    %v1482 = vadd.f32 %v1480, %v1481
    %v1483 = vsel %vm71, %v1467, 0.0
    %v1484 = vsel %vm71, %v1475, 0.0
    %v1485 = vadd.f32 %v1483, %v1484
    %v1486 = vsel %vm71, %v1469, 0.0
    %v1487 = vsel %vm71, %v1477, 0.0
    %v1488 = vadd.f32 %v1486, %v1487
    %v1489 = vsel %vm71, %v1471, 0.0
    %v1490 = vsel %vm71, %v1479, 0.0
    %v1491 = vadd.f32 %v1489, %v1490
    %v1492 = vrcp.pop %v1482
    %v1493 = vrcp.pop %v1485
    %v1494 = vrcp.pop %v1488
    %v1495 = vrcp.pop %v1491
    %v1496 = vmul.f32 %v1465, %v1492
    %v1497 = vmul.f32 %v1467, %v1493
    %v1498 = vmul.f32 %v1469, %v1494
    %v1499 = vmul.f32 %v1471, %v1495
    %v1500 = vmul.f32 %v1473, %v1492
    %v1501 = vmul.f32 %v1475, %v1493
    %v1502 = vmul.f32 %v1477, %v1494
    %v1503 = vmul.f32 %v1479, %v1495
    %1504 = vrot.lane.b32.xlu0 %v1130, 64
    %v1505 = vpop.permute.xlu0 %1504
    %1506 = vrot.lane.b32.xlu0 %v1133, 64
    %v1507 = vpop.permute.xlu0 %1506
    %v1511 = vsel %vm1223, %v1274, 0
    %v1514 = vsel %vm1223, %v1275, 0
    %1516 = vmatpush.msra.mxu0 0.0
    %1517 = vmatpush.msra.mxu0 0.0
    %1518 = vmatpush.msra.mxu0 0.0
    %1519 = vmatpush.msra.mxu0 0.0
    %1520 = vmatpush.msra.mxu0 0.0
    %1521 = vmatpush.msra.mxu0 0.0
    %1522 = vmatpush.msra.mxu0 0.0
    %1523 = vmatpush.msra.mxu0 0.0
    %1524 = vmatpush.msra.mxu0 0.0
    %1525 = vmatpush.msra.mxu0 0.0
    %1526 = vmatpush.msra.mxu0 0.0
    %1527 = vmatpush.msra.mxu0 0.0
    %1528 = vmatpush.msra.mxu0 0.0
    %1529 = vmatpush.msra.mxu0 0.0
    %1530 = vmatpush.msra.mxu0 %v1507
    %1531 = vmatpush.msra.mxu0 %v1505
    %1532 = vmatmul.f32.gmra.mxu0 %v1511
    %v1533 = vpop.f32.mrf.mxu0
    %v1534 = vadd.f32 0.0, %v1533
    %1535 = vmatmul.f32.gmra.mxu0 %v1514
    %v1536 = vpop.f32.mrf.mxu0
    %v1537 = vadd.f32 0.0, %v1536
    %1538 = vdwg.mxu0
    %1539 = vrot.lane.b32.xlu0 %v1136, 64
    %v1540 = vpop.permute.xlu0 %1539
    %1541 = vrot.lane.b32.xlu0 %v1139, 64
    %v1542 = vpop.permute.xlu0 %1541
    %v1546 = vsel %vm1223, %v1276, 0
    %v1549 = vsel %vm1223, %v1277, 0
    %1551 = vmatpush.msra.mxu0 0.0
    %1552 = vmatpush.msra.mxu0 0.0
    %1553 = vmatpush.msra.mxu0 0.0
    %1554 = vmatpush.msra.mxu0 0.0
    %1555 = vmatpush.msra.mxu0 0.0
    %1556 = vmatpush.msra.mxu0 0.0
    %1557 = vmatpush.msra.mxu0 0.0
    %1558 = vmatpush.msra.mxu0 0.0
    %1559 = vmatpush.msra.mxu0 0.0
    %1560 = vmatpush.msra.mxu0 0.0
    %1561 = vmatpush.msra.mxu0 0.0
    %1562 = vmatpush.msra.mxu0 0.0
    %1563 = vmatpush.msra.mxu0 0.0
    %1564 = vmatpush.msra.mxu0 0.0
    %1565 = vmatpush.msra.mxu0 %v1542
    %1566 = vmatpush.msra.mxu0 %v1540
    %1567 = vmatmul.f32.gmra.mxu0 %v1546
    %v1568 = vpop.f32.mrf.mxu0
    %v1569 = vadd.f32 0.0, %v1568
    %1570 = vmatmul.f32.gmra.mxu0 %v1549
    %v1571 = vpop.f32.mrf.mxu0
    %v1572 = vadd.f32 0.0, %v1571
    %1573 = vdwg.mxu0
    %v1575 = vsel %vm71, %v1534, 0
    %v1578 = vsel %vm71, %v1537, 0
    %1580 = vmatpush.msra.mxu0 0.0
    %1581 = vmatpush.msra.mxu0 0.0
    %1582 = vmatpush.msra.mxu0 0.0
    %1583 = vmatpush.msra.mxu0 0.0
    %1584 = vmatpush.msra.mxu0 0.0
    %1585 = vmatpush.msra.mxu0 0.0
    %1586 = vmatpush.msra.mxu0 0.0
    %1587 = vmatpush.msra.mxu0 0.0
    %1588 = vmatpush.msra.mxu0 0.0
    %1589 = vmatpush.msra.mxu0 0.0
    %1590 = vmatpush.msra.mxu0 0.0
    %1591 = vmatpush.msra.mxu0 0.0
    %1592 = vmatpush.msra.mxu0 %v1499
    %1593 = vmatpush.msra.mxu0 %v1498
    %1594 = vmatpush.msra.mxu0 %v1497
    %1595 = vmatpush.msra.mxu0 %v1496
    %1596 = vmatmul.f32.gmra.mxu0 %v1575
    %v1597 = vpop.f32.mrf.mxu0
    %v1598 = vadd.f32 0.0, %v1597
    %1599 = vmatmul.f32.gmra.mxu0 %v1578
    %v1600 = vpop.f32.mrf.mxu0
    %v1601 = vadd.f32 0.0, %v1600
    %1602 = vdwg.mxu0
    %v1604 = vsel %vm71, %v1569, 0
    %v1607 = vsel %vm71, %v1572, 0
    %1609 = vmatpush.msra.mxu0 0.0
    %1610 = vmatpush.msra.mxu0 0.0
    %1611 = vmatpush.msra.mxu0 0.0
    %1612 = vmatpush.msra.mxu0 0.0
    %1613 = vmatpush.msra.mxu0 0.0
    %1614 = vmatpush.msra.mxu0 0.0
    %1615 = vmatpush.msra.mxu0 0.0
    %1616 = vmatpush.msra.mxu0 0.0
    %1617 = vmatpush.msra.mxu0 0.0
    %1618 = vmatpush.msra.mxu0 0.0
    %1619 = vmatpush.msra.mxu0 0.0
    %1620 = vmatpush.msra.mxu0 0.0
    %1621 = vmatpush.msra.mxu0 %v1503
    %1622 = vmatpush.msra.mxu0 %v1502
    %1623 = vmatpush.msra.mxu0 %v1501
    %1624 = vmatpush.msra.mxu0 %v1500
    %1625 = vmatmul.f32.gmra.mxu0 %v1604
    %v1626 = vpop.f32.mrf.mxu0
    %v1627 = vadd.f32 0.0, %v1626
    %1628 = vmatmul.f32.gmra.mxu0 %v1607
    %v1629 = vpop.f32.mrf.mxu0
    %v1630 = vadd.f32 0.0, %v1629
    %1631 = vdwg.mxu0
    %1636 = vrot.lane.b32.xlu0 %v1598, 32
    %v1637 = vpop.permute.xlu0 %1636
    %1638 = vrot.lane.b32.xlu0 %v1601, 32
    %v1639 = vpop.permute.xlu0 %1638
    %1640 = vrot.lane.b32.xlu0 %v1627, 32
    %v1641 = vpop.permute.xlu0 %1640
    %1642 = vrot.lane.b32.xlu0 %v1630, 32
    %v1643 = vpop.permute.xlu0 %1642
    %vm1648 = vcmask 523520
    %1649 = vst.msk [vmem:[#allocation8] sm:$0xff] %vm1648, %v1637
    %1650 = vst.msk [vmem:[#allocation8 + $0x8] sm:$0xff] %vm1648, %v1639
    %1651 = vst.msk [vmem:[#allocation8 + $0x10] sm:$0xff] %vm1648, %v1641
    %1652 = vst.msk [vmem:[#allocation8 + $0x18] sm:$0xff] %vm1648, %v1643
    // Predicated region
    $region26: #{tpu_custom_call.1} parent=1 // pred_check
      _
    $region27: #{tpu_custom_call.1} parent=1 // pred_check_branch
      %1654 = sbr.rel (0) target = $region29
    $region28: #{tpu_custom_call.1} parent=1 // pred_region
      %1656 = vsyncadd [#allocation4], 0
      %s1657 = sshll.u32 [#allocation8], 4
      %s1658 = int_to_ptr.vmem [resolvable:$true] %s1657
      %s1659 = sshll.u32 %s3, 4
      %s1660 = int_to_ptr.hbm [resolvable:$true] %s1659
      %1665 = dma.vmem_to_hbm [thread:$0]  %s1658, 512, %s1660, [#allocation4], 128, 128, 8
    $region29: #{tpu_custom_call.1} parent=1 // pred_fallthru
      _
    // Predicated region
    $region30: #{tpu_custom_call.1} parent=1 // pred_check
      _
    $region31: #{tpu_custom_call.1} parent=1 // pred_check_branch
      %1667 = sbr.rel (0) target = $region33
    $region32: #{tpu_custom_call.1} parent=1 // pred_region
      %1669 = dma.done [#allocation4], 512
    $region33: #{tpu_custom_call.1} parent=1 // pred_fallthru
      _
    %1670 = vsyncpa [#allocation3], 1
    %1671 = vsyncpa [#allocation6], 1
    %1672 = vsyncpa [#allocation4], 1

</llo_original>
